<compile_context>
chip_gen: v7x
topology: tpu7x:2x2x1
jax: 0.10.0
libtpu: 0.0.40
codegen_flags: <defaults>
</compile_context>

<pallas_src>
import functools
import math

import jax
import jax.numpy as jnp
from jax.experimental import pallas as pl
from jax.experimental.pallas import tpu as pltpu


def _round_up(x, m):
    return (x + m - 1) // m * m


def _vmem_capacity_bytes():
    try:
        return int(pltpu.get_tpu_info().vmem_capacity_bytes)
    except Exception:
        return 64 * 2**20          # conservative default (v7x per-core VMEM)


def _mosaic_params(dimension_semantics, vmem_est_bytes):
    # explicit scoped-VMEM limit (generous but safe on every generation)
    vmem_limit = int(min(56 * 2**20, max(32 * 2**20, (5 * vmem_est_bytes) // 4)))
    return pltpu.CompilerParams(dimension_semantics=dimension_semantics,
                                vmem_limit_bytes=vmem_limit)


# --------------------------------------------------------------------------
# Kernel 1: fused (1x1 conv as matmul) + BN + ReLU
# --------------------------------------------------------------------------

def _mm_bn_relu_kernel(a_ref, b_ref, s_ref, t_ref, o_ref):
    k = pl.program_id(2)
    p = jnp.dot(a_ref[...], b_ref[...], preferred_element_type=jnp.float32)

    @pl.when(k == 0)
    def _first():
        o_ref[...] = p                       # no redundant zero-init pass

    @pl.when(k > 0)
    def _acc():
        o_ref[...] += p

    @pl.when(k == pl.num_programs(2) - 1)
    def _fin():
        o_ref[...] = jnp.maximum(o_ref[...] * s_ref[...] + t_ref[...], 0.0)


def matmul_bn_relu(a, b, scale, shift):
    """a:(M,K) bf16, b:(K,N) bf16, scale/shift:(N,) f32 -> relu((a@b)*scale+shift) f32."""
    M, K = a.shape
    K2, Nc = b.shape
    assert K == K2

    # The K (reduction) tile must divide K exactly; keep it as one tile when it fits.
    if K <= 2048:
        tk = K
    else:
        tk = next((t for t in (2048, 1024, 512, 256) if K % t == 0), None)
        if tk is None:                        # rare fallback: pad K only
            Kp = _round_up(K, 512)
            a = jnp.pad(a, ((0, 0), (0, Kp - K)))
            b = jnp.pad(b, ((0, Kp - K), (0, 0)))
            K = Kp
            tk = 512

    # M / N tails are pointwise -> rely on Pallas partial edge blocks (no host pad).
    tm = min(512, _round_up(M, 8))
    if Nc % 256 == 0:
        tn = 256
    elif Nc % 128 == 0:
        tn = 128
    else:
        tn = Nc                               # full dim is always legal
    grid = (pl.cdiv(M, tm), pl.cdiv(Nc, tn), K // tk)

    s2 = scale.astype(jnp.float32).reshape(1, Nc)
    t2 = shift.astype(jnp.float32).reshape(1, Nc)

    vmem_est = 2 * (tm * tk + tk * tn) * a.dtype.itemsize + 2 * tm * tn * 4
    cost = pl.CostEstimate(flops=2 * M * K * Nc, transcendentals=0,
                           bytes_accessed=M * K * 2 + K * Nc * 2 + M * Nc * 4)

    return pl.pallas_call(
        _mm_bn_relu_kernel,
        out_shape=jax.ShapeDtypeStruct((M, Nc), jnp.float32),
        grid_spec=pltpu.PrefetchScalarGridSpec(
            num_scalar_prefetch=0,
            grid=grid,
            in_specs=[pl.BlockSpec((tm, tk), lambda i, j, k: (i, k)),
                      pl.BlockSpec((tk, tn), lambda i, j, k: (k, j)),
                      pl.BlockSpec((1, tn), lambda i, j, k: (0, j)),
                      pl.BlockSpec((1, tn), lambda i, j, k: (0, j))],
            out_specs=pl.BlockSpec((tm, tn), lambda i, j, k: (i, j))),
        compiler_params=_mosaic_params(("parallel", "parallel", "arbitrary"),
                                       vmem_est),
        cost_estimate=cost,
    )(a, b, s2, t2)


# --------------------------------------------------------------------------
# Kernel 2: fused dilated 3x3 conv + BN + ReLU
#           (halo row-slab streaming with in-kernel zero padding, no im2col)
# --------------------------------------------------------------------------

def _dilated_conv_bn_relu_kernel(x_hbm, w_ref, s_ref, t_ref, o_ref,
                                 acc_ref, slab, sem,
                                 *, th, d, H, W, Cin, Cout, nm):
    halo = th + 2 * d
    Wp = W + 2 * d
    nbuf = 2 if nm > 1 else 1
    b = pl.program_id(0)
    m = pl.program_id(1)

    if nm > 1:
        nv_first = th + d                      # valid rows for the first row tile
        r0_last = (nm - 1) * th - d            # source row start of the last tile
        nv_last = H - (nm - 1) * th + d        # valid rows for the last row tile

    def dma(slot, r0, lo, nv):
        # copy nv valid input rows into the interior columns [d, d+W) of the slab
        return pltpu.make_async_copy(
            x_hbm.at[b, pl.ds(r0, nv)],
            slab.at[slot, pl.ds(lo, nv), pl.ds(d, W)],
            sem.at[slot])

    def issue(mm, slot):
        # zero the column gutters (the DMA only ever writes columns [d, d+W))
        zc = jnp.zeros((halo, d, Cin), slab.dtype)
        slab[slot, :, 0:d, :] = zc
        slab[slot, :, d + W:Wp, :] = zc
        if nm == 1:
            slab[slot, 0:d, :, :] = jnp.zeros((d, Wp, Cin), slab.dtype)
            slab[slot, d + H:halo, :, :] = jnp.zeros((halo - d - H, Wp, Cin),
                                                     slab.dtype)
            dma(slot, 0, d, H).start()
        else:
            @pl.when(mm == 0)
            def _first():
                slab[slot, 0:d, :, :] = jnp.zeros((d, Wp, Cin), slab.dtype)
                dma(slot, 0, d, nv_first).start()

            if nm > 2:
                @pl.when(jnp.logical_and(mm > 0, mm < nm - 1))
                def _interior():
                    dma(slot, mm * th - d, 0, halo).start()

            @pl.when(mm == nm - 1)
            def _last():
                if nv_last < halo:
                    slab[slot, nv_last:halo, :, :] = jnp.zeros(
                        (halo - nv_last, Wp, Cin), slab.dtype)
                dma(slot, r0_last, 0, nv_last).start()

    def wait(mm, slot):
        # reconstruct a descriptor of identical shape per case and wait on it
        if nm == 1:
            dma(slot, 0, d, H).wait()
        else:
            @pl.when(mm == 0)
            def _first():
                dma(slot, 0, d, nv_first).wait()

            if nm > 2:
                @pl.when(jnp.logical_and(mm > 0, mm < nm - 1))
                def _interior():
                    dma(slot, mm * th - d, 0, halo).wait()

            @pl.when(mm == nm - 1)
            def _last():
                dma(slot, r0_last, 0, nv_last).wait()

    slot = (m % nbuf) if nbuf > 1 else 0

    # Per-batch DMA chain: prime at m == 0, prefetch only m + 1 within the same
    # batch.  This keeps the batch axis independent so it can run "parallel".
    @pl.when(m == 0)
    def _prime():
        issue(m, slot)

    if nm > 1:
        @pl.when(m + 1 < nm)
        def _prefetch():
            issue(m + 1, (m + 1) % nbuf)

    wait(m, slot)

    # 9 taps as MXU matmuls into an explicit f32 VMEM accumulator.
    # The sublane-unaligned W slice (offset j*d) is hoisted once per column tap.
    first = True
    for j in range(3):
        col = slab[slot, :, j * d:j * d + W, :]          # (halo, W, Cin)
        col = col.reshape(halo * W, Cin)
        for i in range(3):
            a = col[i * d * W:(i * d + th) * W, :]       # (th*W, Cin)
            p = jnp.dot(a, w_ref[i, j], preferred_element_type=jnp.float32)
            if first:
                acc_ref[...] = p
                first = False
            else:
                acc_ref[...] += p

    y = jnp.maximum(acc_ref[...] * s_ref[...] + t_ref[...], 0.0)
    o_ref[...] = y.reshape(1, th, W, Cout)


def _row_tiling(H, d, th_max):
    """Pick (th, n_row_tiles, Hpad) with static edge handling:
    for n > 1 require th >= d and (Hpad - H) <= th - d so only the first and last
    row tiles need clipped (but statically sized) DMAs."""
    n = -(-H // max(8, th_max))
    while n > 1:
        th = _round_up(-(-H // n), 8)
        n2 = -(-H // th)
        if th >= d and (n2 * th - H) <= (th - d):
            return th, n2, n2 * th
        n -= 1
    return H, 1, H


def aspp_conv3x3_bn_relu(x_nhwc, w_hwio, scale, shift, rate, row_tile_max=None):
    """Dilated 3x3 conv (stride 1, padding=rate, dilation=rate) + BN + ReLU."""
    N, H, W, Cin = x_nhwc.shape
    Cout = w_hwio.shape[-1]
    d = int(rate)
    Wp = W + 2 * d
    isz = x_nhwc.dtype.itemsize

    if row_tile_max is None:
        # derive the row tile from this generation's VMEM (slab is the big scratch)
        budget = _vmem_capacity_bytes() // 6
        rows = budget // (2 * Wp * Cin * isz)
        row_tile_max = max(8, min(64, rows - 2 * d))
    th, nm, Hpad = _row_tiling(H, d, row_tile_max)
    halo = th + 2 * d
    nbuf = 2 if nm > 1 else 1

    s2 = scale.astype(jnp.float32).reshape(1, Cout)
    t2 = shift.astype(jnp.float32).reshape(1, Cout)

    kernel = functools.partial(_dilated_conv_bn_relu_kernel,
                               th=th, d=d, H=H, W=W, Cin=Cin, Cout=Cout, nm=nm)

    vmem_est = (nbuf * halo * Wp * Cin * isz        # manual slab buffers
                + th * W * Cout * 4                 # f32 accumulator
                + 2 * 9 * Cin * Cout * isz          # pipelined weight blocks
                + 2 * th * W * Cout * 4             # pipelined output blocks
                + 2 * halo * W * Cin * isz)         # per-j column-slice temps
    cost = pl.CostEstimate(
        flops=2 * N * Hpad * W * Cout * 9 * Cin,
        transcendentals=0,
        bytes_accessed=(N * nm * halo * W * Cin * isz
                        + 9 * Cin * Cout * isz
                        + N * Hpad * W * Cout * 4))

    out = pl.pallas_call(
        kernel,
        out_shape=jax.ShapeDtypeStruct((N, Hpad, W, Cout), jnp.float32),
        grid_spec=pltpu.PrefetchScalarGridSpec(
            num_scalar_prefetch=0,
            grid=(N, nm),
            in_specs=[pl.BlockSpec(memory_space=pl.ANY),          # raw NHWC input in HBM
                      pl.BlockSpec((3, 3, Cin, Cout), lambda b, m: (0, 0, 0, 0)),
                      pl.BlockSpec((1, Cout), lambda b, m: (0, 0)),
                      pl.BlockSpec((1, Cout), lambda b, m: (0, 0))],
            out_specs=pl.BlockSpec((1, th, W, Cout), lambda b, m: (b, m, 0, 0)),
            scratch_shapes=[pltpu.VMEM((th * W, Cout), jnp.float32),
                            pltpu.VMEM((nbuf, halo, Wp, Cin), x_nhwc.dtype),
                            pltpu.SemaphoreType.DMA((nbuf,))]),
        # batch axis is independent (per-batch DMA chain) -> "parallel" for megacore
        compiler_params=_mosaic_params(("parallel", "arbitrary"), vmem_est),
        cost_estimate=cost,
    )(x_nhwc, w_hwio, s2, t2)

    if Hpad != H:
        out = out[:, :H]
    return out


# --------------------------------------------------------------------------
# ASPP_module parameters + forward (mirrors the PyTorch module)
# --------------------------------------------------------------------------

def make_aspp_params(key, inplanes, planes, rate):
    k = 1 if rate == 1 else 3
    fan_in = inplanes * k * k
    std = math.sqrt(2.0 / fan_in)            # kaiming_normal_
    w = std * jax.random.normal(key, (planes, inplanes, k, k), jnp.float32)  # OIHW
    bn = (jnp.ones((planes,), jnp.float32),   # gamma
          jnp.zeros((planes,), jnp.float32),  # beta
          jnp.zeros((planes,), jnp.float32),  # running_mean
          jnp.ones((planes,), jnp.float32))   # running_var
    return {"weight": w, "bn": bn, "rate": rate}


def aspp_forward(params, x_nchw, eps=1e-5, out_layout="NCHW", row_tile_max=None):
    rate = params["rate"]
    w = params["weight"]
    gamma, beta, mean, var = params["bn"]
    scale = gamma / jnp.sqrt(var + eps)
    shift = beta - mean * scale

    # NCHW -> NHWC, bf16 activations/weights for the MXU (f32 accumulation/epilogue)
    x = jnp.transpose(x_nchw, (0, 2, 3, 1)).astype(jnp.bfloat16)
    N, H, W, Cin = x.shape
    Cout = w.shape[0]

    if rate == 1:
        wm = jnp.transpose(w[:, :, 0, 0], (1, 0)).astype(jnp.bfloat16)   # (Cin, Cout)
        y = matmul_bn_relu(x.reshape(N * H * W, Cin), wm, scale, shift)
        y = y.reshape(N, H, W, Cout)
    else:
        w_hwio = jnp.transpose(w, (2, 3, 1, 0)).astype(jnp.bfloat16)     # (3,3,Cin,Cout)
        y = aspp_conv3x3_bn_relu(x, w_hwio, scale, shift, rate,
                                 row_tile_max=row_tile_max)

    if out_layout == "NHWC":
        return y                               # skip the extra HBM transpose pass
    return jnp.transpose(y, (0, 3, 1, 2))      # PyTorch-equivalent NCHW output


# --------------------------------------------------------------------------
# Reference (same bf16-quantized inputs, f32 accumulation) for sanity checking
# --------------------------------------------------------------------------

def aspp_reference(params, x_nchw, eps=1e-5):
    rate = params["rate"]
    w = params["weight"]
    gamma, beta, mean, var = params["bn"]
    scale = gamma / jnp.sqrt(var + eps)
    shift = beta - mean * scale
    xb = x_nchw.astype(jnp.bfloat16).astype(jnp.float32)
    wb = w.astype(jnp.bfloat16).astype(jnp.float32)
    pad = 0 if rate == 1 else rate
    y = jax.lax.conv_general_dilated(
        xb, wb, window_strides=(1, 1),
        padding=((pad, pad), (pad, pad)),
        rhs_dilation=(rate, rate),
        dimension_numbers=("NCHW", "OIHW", "NCHW"))
    y = y * scale[None, :, None, None] + shift[None, :, None, None]
    return jnp.maximum(y, 0.0)


# --------------------------------------------------------------------------
# Main
# --------------------------------------------------------------------------

if __name__ == "__main__":
    key = jax.random.PRNGKey(0)
    k1, k6, k2, kx, kx2 = jax.random.split(key, 5)

    # Small shapes consistent with the module (ASPP over a backbone feature map).
    N, inplanes, H, W = 2, 128, 16, 16
    planes = 128
    x = jax.random.normal(kx, (N, inplanes, H, W), jnp.float32)

    params_r1 = make_aspp_params(k1, inplanes, planes, rate=1)   # 1x1 branch
    params_r6 = make_aspp_params(k6, inplanes, planes, rate=6)   # dilated 3x3 branch

    y1 = aspp_forward(params_r1, x)
    y6 = aspp_forward(params_r6, x)
    jax.block_until_ready((y1, y6))

    assert y1.shape == (N, planes, H, W), y1.shape
    assert y6.shape == (N, planes, H, W), y6.shape
    assert bool(jnp.all(jnp.isfinite(y1))) and bool(jnp.all(jnp.isfinite(y6)))

    r1 = aspp_reference(params_r1, x)
    r6 = aspp_reference(params_r6, x)
    err1 = float(jnp.max(jnp.abs(y1 - r1)))
    err6 = float(jnp.max(jnp.abs(y6 - r6)))
    assert err1 < 5e-2, err1
    assert err6 < 5e-2, err6

    # Exercise the multi-row-tile DMA paths (first / interior / last halo slabs).
    params_r2 = make_aspp_params(k2, inplanes, planes, rate=2)
    x2 = jax.random.normal(kx2, (N, inplanes, 24, 16), jnp.float32)
    y2 = aspp_forward(params_r2, x2, row_tile_max=8)
    jax.block_until_ready(y2)
    r2 = aspp_reference(params_r2, x2)
    err2 = float(jnp.max(jnp.abs(y2 - r2)))
    assert y2.shape == (N, planes, 24, 16), y2.shape
    assert err2 < 5e-2, err2

    print("KERNEL_OK")
</pallas_src>

<mosaic_0001>
module attributes {stable_mosaic.version = 11 : i64} {
  func.func @_mm_bn_relu_kernel(%arg0: i32, %arg1: i32, %arg2: i32, %arg3: memref<512x128xbf16, #tpu.memory_space<vmem>>, %arg4: memref<128x128xbf16, #tpu.memory_space<vmem>>, %arg5: memref<1x128xf32, #tpu.memory_space<vmem>>, %arg6: memref<1x128xf32, #tpu.memory_space<vmem>>, %arg7: memref<512x128xf32, #tpu.memory_space<vmem>>) attributes {dimension_semantics = [#tpu.dimension_semantics<parallel>, #tpu.dimension_semantics<parallel>, #tpu.dimension_semantics<arbitrary>], iteration_bounds = array<i64: 1, 1, 1>, scalar_prefetch = 0 : i64, scratch_operands = 0 : i64, tpu.core_type = #tpu.core_type<tc>, window_params = [{transform_indices = @transform_0, window_bounds = array<i64: 512, 128>}, {transform_indices = @transform_1, window_bounds = array<i64: 128, 128>}, {transform_indices = @transform_2, window_bounds = array<i64: 1, 128>}, {transform_indices = @transform_3, window_bounds = array<i64: 1, 128>}, {transform_indices = @transform_4, window_bounds = array<i64: 512, 128>}]} {
    %c0 = arith.constant 0 : index
    %c0_0 = arith.constant 0 : index
    %0 = vector.load %arg3[%c0, %c0_0] : memref<512x128xbf16, #tpu.memory_space<vmem>>, vector<512x128xbf16>
    %c0_1 = arith.constant 0 : index
    %c0_2 = arith.constant 0 : index
    %1 = vector.load %arg4[%c0_1, %c0_2] : memref<128x128xbf16, #tpu.memory_space<vmem>>, vector<128x128xbf16>
    %cst = arith.constant dense<0.000000e+00> : vector<512x128xf32>
    %2 = tpu.matmul %0, %1, %cst {dimension_numbers = #tpu.dot_dimension_numbers<[1], [0], [0], [1], [0, 0, 1, 1], [], []>} : vector<512x128xbf16>, vector<128x128xbf16>, vector<512x128xf32> -> vector<512x128xf32>
    %c0_i32 = arith.constant 0 : i32
    %3 = arith.cmpi eq, %arg2, %c0_i32 : i32
    %4 = arith.extui %3 : i1 to i32
    %c0_i32_3 = arith.constant 0 : i32
    %5 = arith.cmpi ne, %4, %c0_i32_3 : i32
    scf.if %5 {
      %c0_8 = arith.constant 0 : index
      %c0_9 = arith.constant 0 : index
      %12 = vector.load %arg7[%c0_8, %c0_9] : memref<512x128xf32, #tpu.memory_space<vmem>>, vector<512x128xf32>
      tpu.vector_store %arg7[%c0_8, %c0_9], %2 {strides = array<i32>} : memref<512x128xf32, #tpu.memory_space<vmem>>, vector<512x128xf32>,
    } else {
    }
    %c0_i32_4 = arith.constant 0 : i32
    %6 = arith.cmpi sgt, %arg2, %c0_i32_4 : i32
    %7 = arith.extui %6 : i1 to i32
    %c0_i32_5 = arith.constant 0 : i32
    %8 = arith.cmpi ne, %7, %c0_i32_5 : i32
    scf.if %8 {
      %c0_8 = arith.constant 0 : index
      %c0_9 = arith.constant 0 : index
      %12 = vector.load %arg7[%c0_8, %c0_9] : memref<512x128xf32, #tpu.memory_space<vmem>>, vector<512x128xf32>
      %13 = arith.addf %12, %2 : vector<512x128xf32>
      %c0_10 = arith.constant 0 : index
      %c0_11 = arith.constant 0 : index
      %14 = vector.load %arg7[%c0_10, %c0_11] : memref<512x128xf32, #tpu.memory_space<vmem>>, vector<512x128xf32>
      tpu.vector_store %arg7[%c0_10, %c0_11], %13 {strides = array<i32>} : memref<512x128xf32, #tpu.memory_space<vmem>>, vector<512x128xf32>,
    } else {
    }
    %c0_i32_6 = arith.constant 0 : i32
    %9 = arith.cmpi eq, %arg2, %c0_i32_6 : i32
    %10 = arith.extui %9 : i1 to i32
    %c0_i32_7 = arith.constant 0 : i32
    %11 = arith.cmpi ne, %10, %c0_i32_7 : i32
    scf.if %11 {
      %c0_8 = arith.constant 0 : index
      %c0_9 = arith.constant 0 : index
      %12 = vector.load %arg7[%c0_8, %c0_9] : memref<512x128xf32, #tpu.memory_space<vmem>>, vector<512x128xf32>
      %c0_10 = arith.constant 0 : index
      %c0_11 = arith.constant 0 : index
      %13 = vector.load %arg5[%c0_10, %c0_11] : memref<1x128xf32, #tpu.memory_space<vmem>>, vector<1x128xf32>
      %14 = vector.broadcast %13 : vector<1x128xf32> to vector<512x128xf32>
      %15 = arith.mulf %12, %14 : vector<512x128xf32>
      %c0_12 = arith.constant 0 : index
      %c0_13 = arith.constant 0 : index
      %16 = vector.load %arg6[%c0_12, %c0_13] : memref<1x128xf32, #tpu.memory_space<vmem>>, vector<1x128xf32>
      %17 = vector.broadcast %16 : vector<1x128xf32> to vector<512x128xf32>
      %18 = arith.addf %15, %17 : vector<512x128xf32>
      %cst_14 = arith.constant 0.000000e+00 : f32
      %19 = vector.broadcast %cst_14 : f32 to vector<512x128xf32>
      %20 = arith.maximumf %18, %19 : vector<512x128xf32>
      %c0_15 = arith.constant 0 : index
      %c0_16 = arith.constant 0 : index
      %21 = vector.load %arg7[%c0_15, %c0_16] : memref<512x128xf32, #tpu.memory_space<vmem>>, vector<512x128xf32>
      tpu.vector_store %arg7[%c0_15, %c0_16], %20 {strides = array<i32>} : memref<512x128xf32, #tpu.memory_space<vmem>>, vector<512x128xf32>,
    } else {
    }
    return
  }
  func.func @transform_0(%arg0: i32, %arg1: i32, %arg2: i32) -> (i32, i32) {
    %c0_i32 = arith.constant 0 : i32
    return %arg0, %arg2 : i32, i32
  }
  func.func @transform_1(%arg0: i32, %arg1: i32, %arg2: i32) -> (i32, i32) {
    %c0_i32 = arith.constant 0 : i32
    return %arg2, %arg1 : i32, i32
  }
  func.func @transform_2(%arg0: i32, %arg1: i32, %arg2: i32) -> (i32, i32) {
    %c0_i32 = arith.constant 0 : i32
    %c0_i32_0 = arith.constant 0 : i32
    return %c0_i32, %arg1 : i32, i32
  }
  func.func @transform_3(%arg0: i32, %arg1: i32, %arg2: i32) -> (i32, i32) {
    %c0_i32 = arith.constant 0 : i32
    %c0_i32_0 = arith.constant 0 : i32
    return %c0_i32, %arg1 : i32, i32
  }
  func.func @transform_4(%arg0: i32, %arg1: i32, %arg2: i32) -> (i32, i32) {
    %c0_i32 = arith.constant 0 : i32
    return %arg0, %arg1 : i32, i32
  }
}

</mosaic_0001>

<llo_original>
// kernel: tpu_custom_call.1
$region0: #{tpu_custom_call.1}
  #allocation0 [shape = 'u32[]', space=smem, size = 0x4, offset = 0x4, fixed_abs, tag = 'smem constant byte address 0x4 - core index']
  #allocation1 [shape = 'u32[144,128]{1,0:T(1,128)}', space=vmem, size = 0x12000, scoped, tag = 'internal scratch']
  %s0 = inlined_call_operand.hbm [shape: bf16[512,128], index: 0, kind: input, shape index: {}]
  %s1 = inlined_call_operand.hbm [shape: bf16[128,128], index: 1, kind: input, shape index: {}]
  %s2 = inlined_call_operand.vmem [shape: f32[1,128], index: 2, kind: input, shape index: {}]
  %s3 = inlined_call_operand.vmem [shape: f32[1,128], index: 3, kind: input, shape index: {}]
  %s4 = inlined_call_operand.hbm [shape: f32[512,128], index: 4, kind: output, shape index: {}]
  %s5 = sld [smem:[#allocation0]]
  $region46: #{tpu_custom_call.1} parent=0
    _
  %s7 = ssub.s32 1, %s5
  %s8 = scalar_select 0, %s7, %s5
  $region1: #{tpu_custom_call.1} parent=0
    #allocation2 [shape = 'u8[131072]{0}', space=vmem, size = 0x20000, scoped, tag = 'input window, operand 0, single buffered']
    #allocation3 [shape = 's32[1]{0}', space=sflag, size = 0x4, scoped, tag = 'scoped memory for tpu_custom_call.1']
    #allocation4 [shape = 's32[1]{0}', space=sflag, size = 0x4, scoped, tag = 'scoped memory for tpu_custom_call.1']
    #allocation5 [shape = 'u8[32768]{0}', space=vmem, size = 0x8000, scoped, tag = 'input window, operand 1, single buffered']
    #allocation6 [shape = 's32[1]{0}', space=sflag, size = 0x4, scoped, tag = 'scoped memory for tpu_custom_call.1']
    #allocation7 [shape = 'u8[262144]{0}', space=vmem, size = 0x40000, scoped, tag = 'output window, operand 0, single buffered']
    %9 = vsyncpa [#allocation3], 0
    %10 = vsyncpa [#allocation6], 0
    %11 = vsyncpa [#allocation4], 0
    // Predicated region
    $region2: #{tpu_custom_call.1} parent=1 // pred_check
      _
    $region3: #{tpu_custom_call.1} parent=1 // pred_check_branch
      %13 = sbr.rel (0) target = $region5
    $region4: #{tpu_custom_call.1} parent=1 // pred_region
      %s15 = ssub.s32 4096, 4096
      %16 = vsyncadd [#allocation3], %s15
      %s17 = sshll.u32 [#allocation2], 4
      %s18 = int_to_ptr.vmem [resolvable:$true] %s17
      %23 = dma.hbm_to_vmem [thread:$0]  %s0, 4096, %s18, [#allocation3], 64, 64, 4
    $region5: #{tpu_custom_call.1} parent=1 // pred_fallthru
      _
    // Predicated region
    $region6: #{tpu_custom_call.1} parent=1 // pred_check
      _
    $region7: #{tpu_custom_call.1} parent=1 // pred_check_branch
      %25 = sbr.rel (0) target = $region9
    $region8: #{tpu_custom_call.1} parent=1 // pred_region
      %s27 = ssub.s32 1024, 1024
      %28 = vsyncadd [#allocation6], %s27
      %s29 = sshll.u32 [#allocation5], 4
      %s30 = int_to_ptr.vmem [resolvable:$true] %s29
      %35 = dma.hbm_to_vmem [thread:$0]  %s1, 1024, %s30, [#allocation6], 64, 64, 4
    $region9: #{tpu_custom_call.1} parent=1 // pred_fallthru
      _
    // Predicated region
    $region10: #{tpu_custom_call.1} parent=1 // pred_check
      _
    $region11: #{tpu_custom_call.1} parent=1 // pred_check_branch
      %37 = sbr.rel (0) target = $region13
    $region12: #{tpu_custom_call.1} parent=1 // pred_region
      _
    $region13: #{tpu_custom_call.1} parent=1 // pred_fallthru
      _
    // Predicated region
    $region14: #{tpu_custom_call.1} parent=1 // pred_check
      _
    $region15: #{tpu_custom_call.1} parent=1 // pred_check_branch
      %39 = sbr.rel (0) target = $region17
    $region16: #{tpu_custom_call.1} parent=1 // pred_region
      _
    $region17: #{tpu_custom_call.1} parent=1 // pred_fallthru
      _
    // Predicated region
    $region18: #{tpu_custom_call.1} parent=1 // pred_check
      _
    $region19: #{tpu_custom_call.1} parent=1 // pred_check_branch
      %41 = sbr.rel (0) target = $region21
    $region20: #{tpu_custom_call.1} parent=1 // pred_region
      %42 = dma.done [#allocation3], 4096
    $region21: #{tpu_custom_call.1} parent=1 // pred_fallthru
      _
    // Predicated region
    $region22: #{tpu_custom_call.1} parent=1 // pred_check
      _
    $region23: #{tpu_custom_call.1} parent=1 // pred_check_branch
      %44 = sbr.rel (0) target = $region25
    $region24: #{tpu_custom_call.1} parent=1 // pred_region
      %45 = dma.done [#allocation6], 1024
    $region25: #{tpu_custom_call.1} parent=1 // pred_fallthru
      _
    %v47 = vld [vmem:[#allocation2] sm:$0xf]
    %v48 = vld [vmem:[#allocation2 + $0x4] sm:$0xf]
    %v49 = vld [vmem:[#allocation2 + $0x8] sm:$0xf]
    %v50 = vld [vmem:[#allocation2 + $0xc] sm:$0xf]
    %v51 = vld [vmem:[#allocation2 + $0x10] sm:$0xf]
    %v52 = vld [vmem:[#allocation2 + $0x14] sm:$0xf]
    %v53 = vld [vmem:[#allocation2 + $0x18] sm:$0xf]
    %v54 = vld [vmem:[#allocation2 + $0x1c] sm:$0xf]
    %v55 = vld [vmem:[#allocation2 + $0x20] sm:$0xf]
    %v56 = vld [vmem:[#allocation2 + $0x24] sm:$0xf]
    %v57 = vld [vmem:[#allocation2 + $0x28] sm:$0xf]
    %v58 = vld [vmem:[#allocation2 + $0x2c] sm:$0xf]
    %v59 = vld [vmem:[#allocation2 + $0x30] sm:$0xf]
    %v60 = vld [vmem:[#allocation2 + $0x34] sm:$0xf]
    %v61 = vld [vmem:[#allocation2 + $0x38] sm:$0xf]
    %v62 = vld [vmem:[#allocation2 + $0x3c] sm:$0xf]
    %v63 = vld [vmem:[#allocation2 + $0x40] sm:$0xf]
    %v64 = vld [vmem:[#allocation2 + $0x44] sm:$0xf]
    %v65 = vld [vmem:[#allocation2 + $0x48] sm:$0xf]
    %v66 = vld [vmem:[#allocation2 + $0x4c] sm:$0xf]
    %v67 = vld [vmem:[#allocation2 + $0x50] sm:$0xf]
    %v68 = vld [vmem:[#allocation2 + $0x54] sm:$0xf]
    %v69 = vld [vmem:[#allocation2 + $0x58] sm:$0xf]
    %v70 = vld [vmem:[#allocation2 + $0x5c] sm:$0xf]
    %v71 = vld [vmem:[#allocation2 + $0x60] sm:$0xf]
    %v72 = vld [vmem:[#allocation2 + $0x64] sm:$0xf]
    %v73 = vld [vmem:[#allocation2 + $0x68] sm:$0xf]
    %v74 = vld [vmem:[#allocation2 + $0x6c] sm:$0xf]
    %v75 = vld [vmem:[#allocation2 + $0x70] sm:$0xf]
    %v76 = vld [vmem:[#allocation2 + $0x74] sm:$0xf]
    %v77 = vld [vmem:[#allocation2 + $0x78] sm:$0xf]
    %v78 = vld [vmem:[#allocation2 + $0x7c] sm:$0xf]
    %v79 = vld [vmem:[#allocation2 + $0x80] sm:$0xf]
    %v80 = vld [vmem:[#allocation2 + $0x84] sm:$0xf]
    %v81 = vld [vmem:[#allocation2 + $0x88] sm:$0xf]
    %v82 = vld [vmem:[#allocation2 + $0x8c] sm:$0xf]
    %v83 = vld [vmem:[#allocation2 + $0x90] sm:$0xf]
    %v84 = vld [vmem:[#allocation2 + $0x94] sm:$0xf]
    %v85 = vld [vmem:[#allocation2 + $0x98] sm:$0xf]
    %v86 = vld [vmem:[#allocation2 + $0x9c] sm:$0xf]
    %v87 = vld [vmem:[#allocation2 + $0xa0] sm:$0xf]
    %v88 = vld [vmem:[#allocation2 + $0xa4] sm:$0xf]
    %v89 = vld [vmem:[#allocation2 + $0xa8] sm:$0xf]
    %v90 = vld [vmem:[#allocation2 + $0xac] sm:$0xf]
    %v91 = vld [vmem:[#allocation2 + $0xb0] sm:$0xf]
    %v92 = vld [vmem:[#allocation2 + $0xb4] sm:$0xf]
    %v93 = vld [vmem:[#allocation2 + $0xb8] sm:$0xf]
    %v94 = vld [vmem:[#allocation2 + $0xbc] sm:$0xf]
    %v95 = vld [vmem:[#allocation2 + $0xc0] sm:$0xf]
    %v96 = vld [vmem:[#allocation2 + $0xc4] sm:$0xf]
    %v97 = vld [vmem:[#allocation2 + $0xc8] sm:$0xf]
    %v98 = vld [vmem:[#allocation2 + $0xcc] sm:$0xf]
    %v99 = vld [vmem:[#allocation2 + $0xd0] sm:$0xf]
    %v100 = vld [vmem:[#allocation2 + $0xd4] sm:$0xf]
    %v101 = vld [vmem:[#allocation2 + $0xd8] sm:$0xf]
    %v102 = vld [vmem:[#allocation2 + $0xdc] sm:$0xf]
    %v103 = vld [vmem:[#allocation2 + $0xe0] sm:$0xf]
    %v104 = vld [vmem:[#allocation2 + $0xe4] sm:$0xf]
    %v105 = vld [vmem:[#allocation2 + $0xe8] sm:$0xf]
    %v106 = vld [vmem:[#allocation2 + $0xec] sm:$0xf]
    %v107 = vld [vmem:[#allocation2 + $0xf0] sm:$0xf]
    %v108 = vld [vmem:[#allocation2 + $0xf4] sm:$0xf]
    %v109 = vld [vmem:[#allocation2 + $0xf8] sm:$0xf]
    %v110 = vld [vmem:[#allocation2 + $0xfc] sm:$0xf]
    %v111 = vld [vmem:[#allocation5] sm:$0xf]
    %v112 = vld [vmem:[#allocation5 + $0x4] sm:$0xf]
    %v113 = vld [vmem:[#allocation5 + $0x8] sm:$0xf]
    %v114 = vld [vmem:[#allocation5 + $0xc] sm:$0xf]
    %v115 = vld [vmem:[#allocation5 + $0x10] sm:$0xf]
    %v116 = vld [vmem:[#allocation5 + $0x14] sm:$0xf]
    %v117 = vld [vmem:[#allocation5 + $0x18] sm:$0xf]
    %v118 = vld [vmem:[#allocation5 + $0x1c] sm:$0xf]
    %v119 = vld [vmem:[#allocation5 + $0x20] sm:$0xf]
    %v120 = vld [vmem:[#allocation5 + $0x24] sm:$0xf]
    %v121 = vld [vmem:[#allocation5 + $0x28] sm:$0xf]
    %v122 = vld [vmem:[#allocation5 + $0x2c] sm:$0xf]
    %v123 = vld [vmem:[#allocation5 + $0x30] sm:$0xf]
    %v124 = vld [vmem:[#allocation5 + $0x34] sm:$0xf]
    %v125 = vld [vmem:[#allocation5 + $0x38] sm:$0xf]
    %v126 = vld [vmem:[#allocation5 + $0x3c] sm:$0xf]
    %v191 = vunpack.c.l.b16 %v47
    %v192 = vunpack.c.l.b16 %v48
    %v193 = vunpack.c.l.b16 %v49
    %v194 = vunpack.c.l.b16 %v50
    %v195 = vunpack.c.l.b16 %v51
    %v196 = vunpack.c.l.b16 %v52
    %v197 = vunpack.c.l.b16 %v53
    %v198 = vunpack.c.l.b16 %v54
    %v199 = vunpack.c.l.b16 %v55
    %v200 = vunpack.c.l.b16 %v56
    %v201 = vunpack.c.l.b16 %v57
    %v202 = vunpack.c.l.b16 %v58
    %v203 = vunpack.c.l.b16 %v59
    %v204 = vunpack.c.l.b16 %v60
    %v205 = vunpack.c.l.b16 %v61
    %v206 = vunpack.c.l.b16 %v62
    %v207 = vunpack.c.l.b16 %v63
    %v208 = vunpack.c.l.b16 %v64
    %v209 = vunpack.c.l.b16 %v65
    %v210 = vunpack.c.l.b16 %v66
    %v211 = vunpack.c.l.b16 %v67
    %v212 = vunpack.c.l.b16 %v68
    %v213 = vunpack.c.l.b16 %v69
    %v214 = vunpack.c.l.b16 %v70
    %v215 = vunpack.c.l.b16 %v71
    %v216 = vunpack.c.l.b16 %v72
    %v217 = vunpack.c.l.b16 %v73
    %v218 = vunpack.c.l.b16 %v74
    %v219 = vunpack.c.l.b16 %v75
    %v220 = vunpack.c.l.b16 %v76
    %v221 = vunpack.c.l.b16 %v77
    %v222 = vunpack.c.l.b16 %v78
    %v223 = vunpack.c.l.b16 %v79
    %v224 = vunpack.c.l.b16 %v80
    %v225 = vunpack.c.l.b16 %v81
    %v226 = vunpack.c.l.b16 %v82
    %v227 = vunpack.c.l.b16 %v83
    %v228 = vunpack.c.l.b16 %v84
    %v229 = vunpack.c.l.b16 %v85
    %v230 = vunpack.c.l.b16 %v86
    %v231 = vunpack.c.l.b16 %v87
    %v232 = vunpack.c.l.b16 %v88
    %v233 = vunpack.c.l.b16 %v89
    %v234 = vunpack.c.l.b16 %v90
    %v235 = vunpack.c.l.b16 %v91
    %v236 = vunpack.c.l.b16 %v92
    %v237 = vunpack.c.l.b16 %v93
    %v238 = vunpack.c.l.b16 %v94
    %v239 = vunpack.c.l.b16 %v95
    %v240 = vunpack.c.l.b16 %v96
    %v241 = vunpack.c.l.b16 %v97
    %v242 = vunpack.c.l.b16 %v98
    %v243 = vunpack.c.l.b16 %v99
    %v244 = vunpack.c.l.b16 %v100
    %v245 = vunpack.c.l.b16 %v101
    %v246 = vunpack.c.l.b16 %v102
    %v247 = vunpack.c.l.b16 %v103
    %v248 = vunpack.c.l.b16 %v104
    %v249 = vunpack.c.l.b16 %v105
    %v250 = vunpack.c.l.b16 %v106
    %v251 = vunpack.c.l.b16 %v107
    %v252 = vunpack.c.l.b16 %v108
    %v253 = vunpack.c.l.b16 %v109
    %v254 = vunpack.c.l.b16 %v110
    %v255 = vpack.c.b16 %v192, %v191
    %v256 = vpack.c.b16 %v194, %v193
    %v257 = vpack.c.b16 %v196, %v195
    %v258 = vpack.c.b16 %v198, %v197
    %v259 = vpack.c.b16 %v200, %v199
    %v260 = vpack.c.b16 %v202, %v201
    %v261 = vpack.c.b16 %v204, %v203
    %v262 = vpack.c.b16 %v206, %v205
    %v263 = vpack.c.b16 %v208, %v207
    %v264 = vpack.c.b16 %v210, %v209
    %v265 = vpack.c.b16 %v212, %v211
    %v266 = vpack.c.b16 %v214, %v213
    %v267 = vpack.c.b16 %v216, %v215
    %v268 = vpack.c.b16 %v218, %v217
    %v269 = vpack.c.b16 %v220, %v219
    %v270 = vpack.c.b16 %v222, %v221
    %v271 = vpack.c.b16 %v224, %v223
    %v272 = vpack.c.b16 %v226, %v225
    %v273 = vpack.c.b16 %v228, %v227
    %v274 = vpack.c.b16 %v230, %v229
    %v275 = vpack.c.b16 %v232, %v231
    %v276 = vpack.c.b16 %v234, %v233
    %v277 = vpack.c.b16 %v236, %v235
    %v278 = vpack.c.b16 %v238, %v237
    %v279 = vpack.c.b16 %v240, %v239
    %v280 = vpack.c.b16 %v242, %v241
    %v281 = vpack.c.b16 %v244, %v243
    %v282 = vpack.c.b16 %v246, %v245
    %v283 = vpack.c.b16 %v248, %v247
    %v284 = vpack.c.b16 %v250, %v249
    %v285 = vpack.c.b16 %v252, %v251
    %v286 = vpack.c.b16 %v254, %v253
    %v335 = vunpack.c.l.b16 %v111
    %v336 = vunpack.c.l.b16 %v112
    %v337 = vunpack.c.l.b16 %v113
    %v338 = vunpack.c.l.b16 %v114
    %v339 = vunpack.c.l.b16 %v115
    %v340 = vunpack.c.l.b16 %v116
    %v341 = vunpack.c.l.b16 %v117
    %v342 = vunpack.c.l.b16 %v118
    %v343 = vunpack.c.l.b16 %v119
    %v344 = vunpack.c.l.b16 %v120
    %v345 = vunpack.c.l.b16 %v121
    %v346 = vunpack.c.l.b16 %v122
    %v347 = vunpack.c.l.b16 %v123
    %v348 = vunpack.c.l.b16 %v124
    %v349 = vunpack.c.l.b16 %v125
    %v350 = vunpack.c.l.b16 %v126
    %v351 = vpack.c.b16 %v336, %v335
    %v352 = vpack.c.b16 %v338, %v337
    %v353 = vpack.c.b16 %v340, %v339
    %v354 = vpack.c.b16 %v342, %v341
    %v355 = vpack.c.b16 %v344, %v343
    %v356 = vpack.c.b16 %v346, %v345
    %v357 = vpack.c.b16 %v348, %v347
    %v358 = vpack.c.b16 %v350, %v349
    %367 = vmatprep.subr.bf16.mxu0 0
    %368 = vmatpush1.bf16.msra.mxu0 %v351
    %369 = vmatprep.subr.bf16.mxu0 0
    %370 = vmatpush1.bf16.msra.mxu0 %v352
    %371 = vmatprep.subr.bf16.mxu0 0
    %372 = vmatpush1.bf16.msra.mxu0 %v353
    %373 = vmatprep.subr.bf16.mxu0 0
    %374 = vmatpush1.bf16.msra.mxu0 %v354
    %375 = vmatprep.subr.bf16.mxu0 0
    %376 = vmatpush1.bf16.msra.mxu0 %v355
    %377 = vmatprep.subr.bf16.mxu0 0
    %378 = vmatpush1.bf16.msra.mxu0 %v356
    %379 = vmatprep.subr.bf16.mxu0 0
    %380 = vmatpush1.bf16.msra.mxu0 %v357
    %381 = vmatprep.subr.bf16.mxu0 0
    %382 = vmatpush1.bf16.msra.mxu0 %v358
    %383 = vmatprep.subr.bf16.mxu0 0
    %384 = vmatpush1.bf16.msra.mxu0 0
    %385 = vmatprep.subr.bf16.mxu0 0
    %386 = vmatpush1.bf16.msra.mxu0 0
    %387 = vmatprep.subr.bf16.mxu0 0
    %388 = vmatpush1.bf16.msra.mxu0 0
    %389 = vmatprep.subr.bf16.mxu0 0
    %390 = vmatpush1.bf16.msra.mxu0 0
    %391 = vmatprep.subr.bf16.mxu0 0
    %392 = vmatpush1.bf16.msra.mxu0 0
    %393 = vmatprep.subr.bf16.mxu0 0
    %394 = vmatpush1.bf16.msra.mxu0 0
    %395 = vmatprep.subr.bf16.mxu0 0
    %396 = vmatpush1.bf16.msra.mxu0 0
    %397 = vmatprep.subr.bf16.mxu0 0
    %398 = vmatpush1.bf16.msra.mxu0 0
    %399 = vmatprep.mubr.bf16.mxu0 0
    %400 = vmatmul.mubr.bf16.gmra.mrb[0].mxu0 %v255
    %v401 = vpop.f32.mrb[0].mxu0
    %v402 = vadd.f32 0.0, %v401
    %v403 = vpop.f32.mrb[0].mxu0
    %v404 = vpop.f32.mrb[0].mxu0
    %v405 = vadd.f32 0.0, %v404
    %v406 = vpop.f32.mrb[0].mxu0
    %407 = vmatprep.mubr.bf16.mxu0 0
    %408 = vmatmul.mubr.bf16.gmra.mrb[0].mxu0 %v256
    %v409 = vpop.f32.mrb[0].mxu0
    %v410 = vadd.f32 0.0, %v409
    %v411 = vpop.f32.mrb[0].mxu0
    %v412 = vpop.f32.mrb[0].mxu0
    %v413 = vadd.f32 0.0, %v412
    %v414 = vpop.f32.mrb[0].mxu0
    %415 = vmatprep.mubr.bf16.mxu0 0
    %416 = vmatmul.mubr.bf16.gmra.mrb[0].mxu0 %v257
    %v417 = vpop.f32.mrb[0].mxu0
    %v418 = vadd.f32 0.0, %v417
    %v419 = vpop.f32.mrb[0].mxu0
    %v420 = vpop.f32.mrb[0].mxu0
    %v421 = vadd.f32 0.0, %v420
    %v422 = vpop.f32.mrb[0].mxu0
    %423 = vmatprep.mubr.bf16.mxu0 0
    %424 = vmatmul.mubr.bf16.gmra.mrb[0].mxu0 %v258
    %v425 = vpop.f32.mrb[0].mxu0
    %v426 = vadd.f32 0.0, %v425
    %v427 = vpop.f32.mrb[0].mxu0
    %v428 = vpop.f32.mrb[0].mxu0
    %v429 = vadd.f32 0.0, %v428
    %v430 = vpop.f32.mrb[0].mxu0
    %431 = vmatprep.mubr.bf16.mxu0 0
    %432 = vmatmul.mubr.bf16.gmra.mrb[0].mxu0 %v259
    %v433 = vpop.f32.mrb[0].mxu0
    %v434 = vadd.f32 0.0, %v433
    %v435 = vpop.f32.mrb[0].mxu0
    %v436 = vpop.f32.mrb[0].mxu0
    %v437 = vadd.f32 0.0, %v436
    %v438 = vpop.f32.mrb[0].mxu0
    %439 = vmatprep.mubr.bf16.mxu0 0
    %440 = vmatmul.mubr.bf16.gmra.mrb[0].mxu0 %v260
    %v441 = vpop.f32.mrb[0].mxu0
    %v442 = vadd.f32 0.0, %v441
    %v443 = vpop.f32.mrb[0].mxu0
    %v444 = vpop.f32.mrb[0].mxu0
    %v445 = vadd.f32 0.0, %v444
    %v446 = vpop.f32.mrb[0].mxu0
    %447 = vmatprep.mubr.bf16.mxu0 0
    %448 = vmatmul.mubr.bf16.gmra.mrb[0].mxu0 %v261
    %v449 = vpop.f32.mrb[0].mxu0
    %v450 = vadd.f32 0.0, %v449
    %v451 = vpop.f32.mrb[0].mxu0
    %v452 = vpop.f32.mrb[0].mxu0
    %v453 = vadd.f32 0.0, %v452
    %v454 = vpop.f32.mrb[0].mxu0
    %455 = vmatprep.mubr.bf16.mxu0 0
    %456 = vmatmul.mubr.bf16.gmra.mrb[0].mxu0 %v262
    %v457 = vpop.f32.mrb[0].mxu0
    %v458 = vadd.f32 0.0, %v457
    %v459 = vpop.f32.mrb[0].mxu0
    %v460 = vpop.f32.mrb[0].mxu0
    %v461 = vadd.f32 0.0, %v460
    %v462 = vpop.f32.mrb[0].mxu0
    %463 = vmatprep.mubr.bf16.mxu0 0
    %464 = vmatmul.mubr.bf16.gmra.mrb[0].mxu0 %v263
    %v465 = vpop.f32.mrb[0].mxu0
    %v466 = vadd.f32 0.0, %v465
    %v467 = vpop.f32.mrb[0].mxu0
    %v468 = vpop.f32.mrb[0].mxu0
    %v469 = vadd.f32 0.0, %v468
    %v470 = vpop.f32.mrb[0].mxu0
    %471 = vmatprep.mubr.bf16.mxu0 0
    %472 = vmatmul.mubr.bf16.gmra.mrb[0].mxu0 %v264
    %v473 = vpop.f32.mrb[0].mxu0
    %v474 = vadd.f32 0.0, %v473
    %v475 = vpop.f32.mrb[0].mxu0
    %v476 = vpop.f32.mrb[0].mxu0
    %v477 = vadd.f32 0.0, %v476
    %v478 = vpop.f32.mrb[0].mxu0
    %479 = vmatprep.mubr.bf16.mxu0 0
    %480 = vmatmul.mubr.bf16.gmra.mrb[0].mxu0 %v265
    %v481 = vpop.f32.mrb[0].mxu0
    %v482 = vadd.f32 0.0, %v481
    %v483 = vpop.f32.mrb[0].mxu0
    %v484 = vpop.f32.mrb[0].mxu0
    %v485 = vadd.f32 0.0, %v484
    %v486 = vpop.f32.mrb[0].mxu0
    %487 = vmatprep.mubr.bf16.mxu0 0
    %488 = vmatmul.mubr.bf16.gmra.mrb[0].mxu0 %v266
    %v489 = vpop.f32.mrb[0].mxu0
    %v490 = vadd.f32 0.0, %v489
    %v491 = vpop.f32.mrb[0].mxu0
    %v492 = vpop.f32.mrb[0].mxu0
    %v493 = vadd.f32 0.0, %v492
    %v494 = vpop.f32.mrb[0].mxu0
    %495 = vmatprep.mubr.bf16.mxu0 0
    %496 = vmatmul.mubr.bf16.gmra.mrb[0].mxu0 %v267
    %v497 = vpop.f32.mrb[0].mxu0
    %v498 = vadd.f32 0.0, %v497
    %v499 = vpop.f32.mrb[0].mxu0
    %v500 = vpop.f32.mrb[0].mxu0
    %v501 = vadd.f32 0.0, %v500
    %v502 = vpop.f32.mrb[0].mxu0
    %503 = vmatprep.mubr.bf16.mxu0 0
    %504 = vmatmul.mubr.bf16.gmra.mrb[0].mxu0 %v268
    %v505 = vpop.f32.mrb[0].mxu0
    %v506 = vadd.f32 0.0, %v505
    %v507 = vpop.f32.mrb[0].mxu0
    %v508 = vpop.f32.mrb[0].mxu0
    %v509 = vadd.f32 0.0, %v508
    %v510 = vpop.f32.mrb[0].mxu0
    %511 = vmatprep.mubr.bf16.mxu0 0
    %512 = vmatmul.mubr.bf16.gmra.mrb[0].mxu0 %v269
    %v513 = vpop.f32.mrb[0].mxu0
    %v514 = vadd.f32 0.0, %v513
    %v515 = vpop.f32.mrb[0].mxu0
    %v516 = vpop.f32.mrb[0].mxu0
    %v517 = vadd.f32 0.0, %v516
    %v518 = vpop.f32.mrb[0].mxu0
    %519 = vmatprep.mubr.bf16.mxu0 0
    %520 = vmatmul.mubr.bf16.gmra.mrb[0].mxu0 %v270
    %v521 = vpop.f32.mrb[0].mxu0
    %v522 = vadd.f32 0.0, %v521
    %v523 = vpop.f32.mrb[0].mxu0
    %v524 = vpop.f32.mrb[0].mxu0
    %v525 = vadd.f32 0.0, %v524
    %v526 = vpop.f32.mrb[0].mxu0
    %527 = vmatprep.mubr.bf16.mxu0 0
    %528 = vmatmul.mubr.bf16.gmra.mrb[0].mxu0 %v271
    %v529 = vpop.f32.mrb[0].mxu0
    %v530 = vadd.f32 0.0, %v529
    %v531 = vpop.f32.mrb[0].mxu0
    %v532 = vpop.f32.mrb[0].mxu0
    %v533 = vadd.f32 0.0, %v532
    %v534 = vpop.f32.mrb[0].mxu0
    %535 = vmatprep.mubr.bf16.mxu0 0
    %536 = vmatmul.mubr.bf16.gmra.mrb[0].mxu0 %v272
    %v537 = vpop.f32.mrb[0].mxu0
    %v538 = vadd.f32 0.0, %v537
    %v539 = vpop.f32.mrb[0].mxu0
    %v540 = vpop.f32.mrb[0].mxu0
    %v541 = vadd.f32 0.0, %v540
    %v542 = vpop.f32.mrb[0].mxu0
    %543 = vmatprep.mubr.bf16.mxu0 0
    %544 = vmatmul.mubr.bf16.gmra.mrb[0].mxu0 %v273
    %v545 = vpop.f32.mrb[0].mxu0
    %v546 = vadd.f32 0.0, %v545
    %v547 = vpop.f32.mrb[0].mxu0
    %v548 = vpop.f32.mrb[0].mxu0
    %v549 = vadd.f32 0.0, %v548
    %v550 = vpop.f32.mrb[0].mxu0
    %551 = vmatprep.mubr.bf16.mxu0 0
    %552 = vmatmul.mubr.bf16.gmra.mrb[0].mxu0 %v274
    %v553 = vpop.f32.mrb[0].mxu0
    %v554 = vadd.f32 0.0, %v553
    %v555 = vpop.f32.mrb[0].mxu0
    %v556 = vpop.f32.mrb[0].mxu0
    %v557 = vadd.f32 0.0, %v556
    %v558 = vpop.f32.mrb[0].mxu0
    %559 = vmatprep.mubr.bf16.mxu0 0
    %560 = vmatmul.mubr.bf16.gmra.mrb[0].mxu0 %v275
    %v561 = vpop.f32.mrb[0].mxu0
    %v562 = vadd.f32 0.0, %v561
    %v563 = vpop.f32.mrb[0].mxu0
    %v564 = vpop.f32.mrb[0].mxu0
    %v565 = vadd.f32 0.0, %v564
    %v566 = vpop.f32.mrb[0].mxu0
    %567 = vmatprep.mubr.bf16.mxu0 0
    %568 = vmatmul.mubr.bf16.gmra.mrb[0].mxu0 %v276
    %v569 = vpop.f32.mrb[0].mxu0
    %v570 = vadd.f32 0.0, %v569
    %v571 = vpop.f32.mrb[0].mxu0
    %v572 = vpop.f32.mrb[0].mxu0
    %v573 = vadd.f32 0.0, %v572
    %v574 = vpop.f32.mrb[0].mxu0
    %575 = vmatprep.mubr.bf16.mxu0 0
    %576 = vmatmul.mubr.bf16.gmra.mrb[0].mxu0 %v277
    %v577 = vpop.f32.mrb[0].mxu0
    %v578 = vadd.f32 0.0, %v577
    %v579 = vpop.f32.mrb[0].mxu0
    %v580 = vpop.f32.mrb[0].mxu0
    %v581 = vadd.f32 0.0, %v580
    %v582 = vpop.f32.mrb[0].mxu0
    %583 = vmatprep.mubr.bf16.mxu0 0
    %584 = vmatmul.mubr.bf16.gmra.mrb[0].mxu0 %v278
    %v585 = vpop.f32.mrb[0].mxu0
    %v586 = vadd.f32 0.0, %v585
    %v587 = vpop.f32.mrb[0].mxu0
    %v588 = vpop.f32.mrb[0].mxu0
    %v589 = vadd.f32 0.0, %v588
    %v590 = vpop.f32.mrb[0].mxu0
    %591 = vmatprep.mubr.bf16.mxu0 0
    %592 = vmatmul.mubr.bf16.gmra.mrb[0].mxu0 %v279
    %v593 = vpop.f32.mrb[0].mxu0
    %v594 = vadd.f32 0.0, %v593
    %v595 = vpop.f32.mrb[0].mxu0
    %v596 = vpop.f32.mrb[0].mxu0
    %v597 = vadd.f32 0.0, %v596
    %v598 = vpop.f32.mrb[0].mxu0
    %599 = vmatprep.mubr.bf16.mxu0 0
    %600 = vmatmul.mubr.bf16.gmra.mrb[0].mxu0 %v280
    %v601 = vpop.f32.mrb[0].mxu0
    %v602 = vadd.f32 0.0, %v601
    %v603 = vpop.f32.mrb[0].mxu0
    %v604 = vpop.f32.mrb[0].mxu0
    %v605 = vadd.f32 0.0, %v604
    %v606 = vpop.f32.mrb[0].mxu0
    %607 = vmatprep.mubr.bf16.mxu0 0
    %608 = vmatmul.mubr.bf16.gmra.mrb[0].mxu0 %v281
    %v609 = vpop.f32.mrb[0].mxu0
    %v610 = vadd.f32 0.0, %v609
    %v611 = vpop.f32.mrb[0].mxu0
    %v612 = vpop.f32.mrb[0].mxu0
    %v613 = vadd.f32 0.0, %v612
    %v614 = vpop.f32.mrb[0].mxu0
    %615 = vmatprep.mubr.bf16.mxu0 0
    %616 = vmatmul.mubr.bf16.gmra.mrb[0].mxu0 %v282
    %v617 = vpop.f32.mrb[0].mxu0
    %v618 = vadd.f32 0.0, %v617
    %v619 = vpop.f32.mrb[0].mxu0
    %v620 = vpop.f32.mrb[0].mxu0
    %v621 = vadd.f32 0.0, %v620
    %v622 = vpop.f32.mrb[0].mxu0
    %623 = vmatprep.mubr.bf16.mxu0 0
    %624 = vmatmul.mubr.bf16.gmra.mrb[0].mxu0 %v283
    %v625 = vpop.f32.mrb[0].mxu0
    %v626 = vadd.f32 0.0, %v625
    %v627 = vpop.f32.mrb[0].mxu0
    %v628 = vpop.f32.mrb[0].mxu0
    %v629 = vadd.f32 0.0, %v628
    %v630 = vpop.f32.mrb[0].mxu0
    %631 = vmatprep.mubr.bf16.mxu0 0
    %632 = vmatmul.mubr.bf16.gmra.mrb[0].mxu0 %v284
    %v633 = vpop.f32.mrb[0].mxu0
    %v634 = vadd.f32 0.0, %v633
    %v635 = vpop.f32.mrb[0].mxu0
    %v636 = vpop.f32.mrb[0].mxu0
    %v637 = vadd.f32 0.0, %v636
    %v638 = vpop.f32.mrb[0].mxu0
    %639 = vmatprep.mubr.bf16.mxu0 0
    %640 = vmatmul.mubr.bf16.gmra.mrb[0].mxu0 %v285
    %v641 = vpop.f32.mrb[0].mxu0
    %v642 = vadd.f32 0.0, %v641
    %v643 = vpop.f32.mrb[0].mxu0
    %v644 = vpop.f32.mrb[0].mxu0
    %v645 = vadd.f32 0.0, %v644
    %v646 = vpop.f32.mrb[0].mxu0
    %647 = vmatprep.mubr.bf16.mxu0 0
    %648 = vmatmul.mubr.bf16.gmra.mrb[0].mxu0 %v286
    %v649 = vpop.f32.mrb[0].mxu0
    %v650 = vadd.f32 0.0, %v649
    %v651 = vpop.f32.mrb[0].mxu0
    %v652 = vpop.f32.mrb[0].mxu0
    %v653 = vadd.f32 0.0, %v652
    %v654 = vpop.f32.mrb[0].mxu0
    %655 = vdwg.mxu0
    %p656 = scmp.eq.s32.totalorder 0, 0
    // Predicated region
    $region26: #{tpu_custom_call.1} parent=1 // pred_check
      %p657 = pneg %p656
    $region27: #{tpu_custom_call.1} parent=1 // pred_check_branch
      %659 = sbr.rel (%p657) target = $region29
    $region28: #{tpu_custom_call.1} parent=1 // pred_region
      %660 = vst [vmem:[#allocation7] sm:$0xff] %v402
      %661 = vst [vmem:[#allocation7 + $0x8] sm:$0xff] %v405
      %662 = vst [vmem:[#allocation7 + $0x10] sm:$0xff] %v410
      %663 = vst [vmem:[#allocation7 + $0x18] sm:$0xff] %v413
      %664 = vst [vmem:[#allocation7 + $0x20] sm:$0xff] %v418
      %665 = vst [vmem:[#allocation7 + $0x28] sm:$0xff] %v421
      %666 = vst [vmem:[#allocation7 + $0x30] sm:$0xff] %v426
      %667 = vst [vmem:[#allocation7 + $0x38] sm:$0xff] %v429
      %668 = vst [vmem:[#allocation7 + $0x40] sm:$0xff] %v434
      %669 = vst [vmem:[#allocation7 + $0x48] sm:$0xff] %v437
      %670 = vst [vmem:[#allocation7 + $0x50] sm:$0xff] %v442
      %671 = vst [vmem:[#allocation7 + $0x58] sm:$0xff] %v445
      %672 = vst [vmem:[#allocation7 + $0x60] sm:$0xff] %v450
      %673 = vst [vmem:[#allocation7 + $0x68] sm:$0xff] %v453
      %674 = vst [vmem:[#allocation7 + $0x70] sm:$0xff] %v458
      %675 = vst [vmem:[#allocation7 + $0x78] sm:$0xff] %v461
      %676 = vst [vmem:[#allocation7 + $0x80] sm:$0xff] %v466
      %677 = vst [vmem:[#allocation7 + $0x88] sm:$0xff] %v469
      %678 = vst [vmem:[#allocation7 + $0x90] sm:$0xff] %v474
      %679 = vst [vmem:[#allocation7 + $0x98] sm:$0xff] %v477
      %680 = vst [vmem:[#allocation7 + $0xa0] sm:$0xff] %v482
      %681 = vst [vmem:[#allocation7 + $0xa8] sm:$0xff] %v485
      %682 = vst [vmem:[#allocation7 + $0xb0] sm:$0xff] %v490
      %683 = vst [vmem:[#allocation7 + $0xb8] sm:$0xff] %v493
      %684 = vst [vmem:[#allocation7 + $0xc0] sm:$0xff] %v498
      %685 = vst [vmem:[#allocation7 + $0xc8] sm:$0xff] %v501
      %686 = vst [vmem:[#allocation7 + $0xd0] sm:$0xff] %v506
      %687 = vst [vmem:[#allocation7 + $0xd8] sm:$0xff] %v509
      %688 = vst [vmem:[#allocation7 + $0xe0] sm:$0xff] %v514
      %689 = vst [vmem:[#allocation7 + $0xe8] sm:$0xff] %v517
      %690 = vst [vmem:[#allocation7 + $0xf0] sm:$0xff] %v522
      %691 = vst [vmem:[#allocation7 + $0xf8] sm:$0xff] %v525
      %692 = vst [vmem:[#allocation7 + $0x100] sm:$0xff] %v530
      %693 = vst [vmem:[#allocation7 + $0x108] sm:$0xff] %v533
      %694 = vst [vmem:[#allocation7 + $0x110] sm:$0xff] %v538
      %695 = vst [vmem:[#allocation7 + $0x118] sm:$0xff] %v541
      %696 = vst [vmem:[#allocation7 + $0x120] sm:$0xff] %v546
      %697 = vst [vmem:[#allocation7 + $0x128] sm:$0xff] %v549
      %698 = vst [vmem:[#allocation7 + $0x130] sm:$0xff] %v554
      %699 = vst [vmem:[#allocation7 + $0x138] sm:$0xff] %v557
      %700 = vst [vmem:[#allocation7 + $0x140] sm:$0xff] %v562
      %701 = vst [vmem:[#allocation7 + $0x148] sm:$0xff] %v565
      %702 = vst [vmem:[#allocation7 + $0x150] sm:$0xff] %v570
      %703 = vst [vmem:[#allocation7 + $0x158] sm:$0xff] %v573
      %704 = vst [vmem:[#allocation7 + $0x160] sm:$0xff] %v578
      %705 = vst [vmem:[#allocation7 + $0x168] sm:$0xff] %v581
      %706 = vst [vmem:[#allocation7 + $0x170] sm:$0xff] %v586
      %707 = vst [vmem:[#allocation7 + $0x178] sm:$0xff] %v589
      %708 = vst [vmem:[#allocation7 + $0x180] sm:$0xff] %v594
      %709 = vst [vmem:[#allocation7 + $0x188] sm:$0xff] %v597
      %710 = vst [vmem:[#allocation7 + $0x190] sm:$0xff] %v602
      %711 = vst [vmem:[#allocation7 + $0x198] sm:$0xff] %v605
      %712 = vst [vmem:[#allocation7 + $0x1a0] sm:$0xff] %v610
      %713 = vst [vmem:[#allocation7 + $0x1a8] sm:$0xff] %v613
      %714 = vst [vmem:[#allocation7 + $0x1b0] sm:$0xff] %v618
      %715 = vst [vmem:[#allocation7 + $0x1b8] sm:$0xff] %v621
      %716 = vst [vmem:[#allocation7 + $0x1c0] sm:$0xff] %v626
      %717 = vst [vmem:[#allocation7 + $0x1c8] sm:$0xff] %v629
      %718 = vst [vmem:[#allocation7 + $0x1d0] sm:$0xff] %v634
      %719 = vst [vmem:[#allocation7 + $0x1d8] sm:$0xff] %v637
      %720 = vst [vmem:[#allocation7 + $0x1e0] sm:$0xff] %v642
      %721 = vst [vmem:[#allocation7 + $0x1e8] sm:$0xff] %v645
      %722 = vst [vmem:[#allocation7 + $0x1f0] sm:$0xff] %v650
      %723 = vst [vmem:[#allocation7 + $0x1f8] sm:$0xff] %v653
    $region29: #{tpu_custom_call.1} parent=1 // pred_fallthru
      _
    %p724 = scmp.gt.s32.totalorder 0, 0
    // Predicated region
    $region30: #{tpu_custom_call.1} parent=1 // pred_check
      %p725 = pneg %p724
    $region31: #{tpu_custom_call.1} parent=1 // pred_check_branch
      %727 = sbr.rel (%p725) target = $region33
    $region32: #{tpu_custom_call.1} parent=1 // pred_region
      %v728 = vld [vmem:[#allocation7] sm:$0xff]
      %v729 = vld [vmem:[#allocation7 + $0x8] sm:$0xff]
      %v730 = vld [vmem:[#allocation7 + $0x10] sm:$0xff]
      %v731 = vld [vmem:[#allocation7 + $0x18] sm:$0xff]
      %v732 = vld [vmem:[#allocation7 + $0x20] sm:$0xff]
      %v733 = vld [vmem:[#allocation7 + $0x28] sm:$0xff]
      %v734 = vld [vmem:[#allocation7 + $0x30] sm:$0xff]
      %v735 = vld [vmem:[#allocation7 + $0x38] sm:$0xff]
      %v736 = vld [vmem:[#allocation7 + $0x40] sm:$0xff]
      %v737 = vld [vmem:[#allocation7 + $0x48] sm:$0xff]
      %v738 = vld [vmem:[#allocation7 + $0x50] sm:$0xff]
      %v739 = vld [vmem:[#allocation7 + $0x58] sm:$0xff]
      %v740 = vld [vmem:[#allocation7 + $0x60] sm:$0xff]
      %v741 = vld [vmem:[#allocation7 + $0x68] sm:$0xff]
      %v742 = vld [vmem:[#allocation7 + $0x70] sm:$0xff]
      %v743 = vld [vmem:[#allocation7 + $0x78] sm:$0xff]
      %v744 = vld [vmem:[#allocation7 + $0x80] sm:$0xff]
      %v745 = vld [vmem:[#allocation7 + $0x88] sm:$0xff]
      %v746 = vld [vmem:[#allocation7 + $0x90] sm:$0xff]
      %v747 = vld [vmem:[#allocation7 + $0x98] sm:$0xff]
      %v748 = vld [vmem:[#allocation7 + $0xa0] sm:$0xff]
      %v749 = vld [vmem:[#allocation7 + $0xa8] sm:$0xff]
      %v750 = vld [vmem:[#allocation7 + $0xb0] sm:$0xff]
      %v751 = vld [vmem:[#allocation7 + $0xb8] sm:$0xff]
      %v752 = vld [vmem:[#allocation7 + $0xc0] sm:$0xff]
      %v753 = vld [vmem:[#allocation7 + $0xc8] sm:$0xff]
      %v754 = vld [vmem:[#allocation7 + $0xd0] sm:$0xff]
      %v755 = vld [vmem:[#allocation7 + $0xd8] sm:$0xff]
      %v756 = vld [vmem:[#allocation7 + $0xe0] sm:$0xff]
      %v757 = vld [vmem:[#allocation7 + $0xe8] sm:$0xff]
      %v758 = vld [vmem:[#allocation7 + $0xf0] sm:$0xff]
      %v759 = vld [vmem:[#allocation7 + $0xf8] sm:$0xff]
      %v760 = vld [vmem:[#allocation7 + $0x100] sm:$0xff]
      %v761 = vld [vmem:[#allocation7 + $0x108] sm:$0xff]
      %v762 = vld [vmem:[#allocation7 + $0x110] sm:$0xff]
      %v763 = vld [vmem:[#allocation7 + $0x118] sm:$0xff]
      %v764 = vld [vmem:[#allocation7 + $0x120] sm:$0xff]
      %v765 = vld [vmem:[#allocation7 + $0x128] sm:$0xff]
      %v766 = vld [vmem:[#allocation7 + $0x130] sm:$0xff]
      %v767 = vld [vmem:[#allocation7 + $0x138] sm:$0xff]
      %v768 = vld [vmem:[#allocation7 + $0x140] sm:$0xff]
      %v769 = vld [vmem:[#allocation7 + $0x148] sm:$0xff]
      %v770 = vld [vmem:[#allocation7 + $0x150] sm:$0xff]
      %v771 = vld [vmem:[#allocation7 + $0x158] sm:$0xff]
      %v772 = vld [vmem:[#allocation7 + $0x160] sm:$0xff]
      %v773 = vld [vmem:[#allocation7 + $0x168] sm:$0xff]
      %v774 = vld [vmem:[#allocation7 + $0x170] sm:$0xff]
      %v775 = vld [vmem:[#allocation7 + $0x178] sm:$0xff]
      %v776 = vld [vmem:[#allocation7 + $0x180] sm:$0xff]
      %v777 = vld [vmem:[#allocation7 + $0x188] sm:$0xff]
      %v778 = vld [vmem:[#allocation7 + $0x190] sm:$0xff]
      %v779 = vld [vmem:[#allocation7 + $0x198] sm:$0xff]
      %v780 = vld [vmem:[#allocation7 + $0x1a0] sm:$0xff]
      %v781 = vld [vmem:[#allocation7 + $0x1a8] sm:$0xff]
      %v782 = vld [vmem:[#allocation7 + $0x1b0] sm:$0xff]
      %v783 = vld [vmem:[#allocation7 + $0x1b8] sm:$0xff]
      %v784 = vld [vmem:[#allocation7 + $0x1c0] sm:$0xff]
      %v785 = vld [vmem:[#allocation7 + $0x1c8] sm:$0xff]
      %v786 = vld [vmem:[#allocation7 + $0x1d0] sm:$0xff]
      %v787 = vld [vmem:[#allocation7 + $0x1d8] sm:$0xff]
      %v788 = vld [vmem:[#allocation7 + $0x1e0] sm:$0xff]
      %v789 = vld [vmem:[#allocation7 + $0x1e8] sm:$0xff]
      %v790 = vld [vmem:[#allocation7 + $0x1f0] sm:$0xff]
      %v791 = vld [vmem:[#allocation7 + $0x1f8] sm:$0xff]
      %v792 = vadd.f32 %v728, %v402
      %v793 = vadd.f32 %v729, %v405
      %v794 = vadd.f32 %v730, %v410
      %v795 = vadd.f32 %v731, %v413
      %v796 = vadd.f32 %v732, %v418
      %v797 = vadd.f32 %v733, %v421
      %v798 = vadd.f32 %v734, %v426
      %v799 = vadd.f32 %v735, %v429
      %v800 = vadd.f32 %v736, %v434
      %v801 = vadd.f32 %v737, %v437
      %v802 = vadd.f32 %v738, %v442
      %v803 = vadd.f32 %v739, %v445
      %v804 = vadd.f32 %v740, %v450
      %v805 = vadd.f32 %v741, %v453
      %v806 = vadd.f32 %v742, %v458
      %v807 = vadd.f32 %v743, %v461
      %v808 = vadd.f32 %v744, %v466
      %v809 = vadd.f32 %v745, %v469
      %v810 = vadd.f32 %v746, %v474
      %v811 = vadd.f32 %v747, %v477
      %v812 = vadd.f32 %v748, %v482
      %v813 = vadd.f32 %v749, %v485
      %v814 = vadd.f32 %v750, %v490
      %v815 = vadd.f32 %v751, %v493
      %v816 = vadd.f32 %v752, %v498
      %v817 = vadd.f32 %v753, %v501
      %v818 = vadd.f32 %v754, %v506
      %v819 = vadd.f32 %v755, %v509
      %v820 = vadd.f32 %v756, %v514
      %v821 = vadd.f32 %v757, %v517
      %v822 = vadd.f32 %v758, %v522
      %v823 = vadd.f32 %v759, %v525
      %v824 = vadd.f32 %v760, %v530
      %v825 = vadd.f32 %v761, %v533
      %v826 = vadd.f32 %v762, %v538
      %v827 = vadd.f32 %v763, %v541
      %v828 = vadd.f32 %v764, %v546
      %v829 = vadd.f32 %v765, %v549
      %v830 = vadd.f32 %v766, %v554
      %v831 = vadd.f32 %v767, %v557
      %v832 = vadd.f32 %v768, %v562
      %v833 = vadd.f32 %v769, %v565
      %v834 = vadd.f32 %v770, %v570
      %v835 = vadd.f32 %v771, %v573
      %v836 = vadd.f32 %v772, %v578
      %v837 = vadd.f32 %v773, %v581
      %v838 = vadd.f32 %v774, %v586
      %v839 = vadd.f32 %v775, %v589
      %v840 = vadd.f32 %v776, %v594
      %v841 = vadd.f32 %v777, %v597
      %v842 = vadd.f32 %v778, %v602
      %v843 = vadd.f32 %v779, %v605
      %v844 = vadd.f32 %v780, %v610
      %v845 = vadd.f32 %v781, %v613
      %v846 = vadd.f32 %v782, %v618
      %v847 = vadd.f32 %v783, %v621
      %v848 = vadd.f32 %v784, %v626
      %v849 = vadd.f32 %v785, %v629
      %v850 = vadd.f32 %v786, %v634
      %v851 = vadd.f32 %v787, %v637
      %v852 = vadd.f32 %v788, %v642
      %v853 = vadd.f32 %v789, %v645
      %v854 = vadd.f32 %v790, %v650
      %v855 = vadd.f32 %v791, %v653
      %856 = vst [vmem:[#allocation7] sm:$0xff] %v792
      %857 = vst [vmem:[#allocation7 + $0x8] sm:$0xff] %v793
      %858 = vst [vmem:[#allocation7 + $0x10] sm:$0xff] %v794
      %859 = vst [vmem:[#allocation7 + $0x18] sm:$0xff] %v795
      %860 = vst [vmem:[#allocation7 + $0x20] sm:$0xff] %v796
      %861 = vst [vmem:[#allocation7 + $0x28] sm:$0xff] %v797
      %862 = vst [vmem:[#allocation7 + $0x30] sm:$0xff] %v798
      %863 = vst [vmem:[#allocation7 + $0x38] sm:$0xff] %v799
      %864 = vst [vmem:[#allocation7 + $0x40] sm:$0xff] %v800
      %865 = vst [vmem:[#allocation7 + $0x48] sm:$0xff] %v801
      %866 = vst [vmem:[#allocation7 + $0x50] sm:$0xff] %v802
      %867 = vst [vmem:[#allocation7 + $0x58] sm:$0xff] %v803
      %868 = vst [vmem:[#allocation7 + $0x60] sm:$0xff] %v804
      %869 = vst [vmem:[#allocation7 + $0x68] sm:$0xff] %v805
      %870 = vst [vmem:[#allocation7 + $0x70] sm:$0xff] %v806
      %871 = vst [vmem:[#allocation7 + $0x78] sm:$0xff] %v807
      %872 = vst [vmem:[#allocation7 + $0x80] sm:$0xff] %v808
      %873 = vst [vmem:[#allocation7 + $0x88] sm:$0xff] %v809
      %874 = vst [vmem:[#allocation7 + $0x90] sm:$0xff] %v810
      %875 = vst [vmem:[#allocation7 + $0x98] sm:$0xff] %v811
      %876 = vst [vmem:[#allocation7 + $0xa0] sm:$0xff] %v812
      %877 = vst [vmem:[#allocation7 + $0xa8] sm:$0xff] %v813
      %878 = vst [vmem:[#allocation7 + $0xb0] sm:$0xff] %v814
      %879 = vst [vmem:[#allocation7 + $0xb8] sm:$0xff] %v815
      %880 = vst [vmem:[#allocation7 + $0xc0] sm:$0xff] %v816
      %881 = vst [vmem:[#allocation7 + $0xc8] sm:$0xff] %v817
      %882 = vst [vmem:[#allocation7 + $0xd0] sm:$0xff] %v818
      %883 = vst [vmem:[#allocation7 + $0xd8] sm:$0xff] %v819
      %884 = vst [vmem:[#allocation7 + $0xe0] sm:$0xff] %v820
      %885 = vst [vmem:[#allocation7 + $0xe8] sm:$0xff] %v821
      %886 = vst [vmem:[#allocation7 + $0xf0] sm:$0xff] %v822
      %887 = vst [vmem:[#allocation7 + $0xf8] sm:$0xff] %v823
      %888 = vst [vmem:[#allocation7 + $0x100] sm:$0xff] %v824
      %889 = vst [vmem:[#allocation7 + $0x108] sm:$0xff] %v825
      %890 = vst [vmem:[#allocation7 + $0x110] sm:$0xff] %v826
      %891 = vst [vmem:[#allocation7 + $0x118] sm:$0xff] %v827
      %892 = vst [vmem:[#allocation7 + $0x120] sm:$0xff] %v828
      %893 = vst [vmem:[#allocation7 + $0x128] sm:$0xff] %v829
      %894 = vst [vmem:[#allocation7 + $0x130] sm:$0xff] %v830
      %895 = vst [vmem:[#allocation7 + $0x138] sm:$0xff] %v831
      %896 = vst [vmem:[#allocation7 + $0x140] sm:$0xff] %v832
      %897 = vst [vmem:[#allocation7 + $0x148] sm:$0xff] %v833
      %898 = vst [vmem:[#allocation7 + $0x150] sm:$0xff] %v834
      %899 = vst [vmem:[#allocation7 + $0x158] sm:$0xff] %v835
      %900 = vst [vmem:[#allocation7 + $0x160] sm:$0xff] %v836
      %901 = vst [vmem:[#allocation7 + $0x168] sm:$0xff] %v837
      %902 = vst [vmem:[#allocation7 + $0x170] sm:$0xff] %v838
      %903 = vst [vmem:[#allocation7 + $0x178] sm:$0xff] %v839
      %904 = vst [vmem:[#allocation7 + $0x180] sm:$0xff] %v840
      %905 = vst [vmem:[#allocation7 + $0x188] sm:$0xff] %v841
      %906 = vst [vmem:[#allocation7 + $0x190] sm:$0xff] %v842
      %907 = vst [vmem:[#allocation7 + $0x198] sm:$0xff] %v843
      %908 = vst [vmem:[#allocation7 + $0x1a0] sm:$0xff] %v844
      %909 = vst [vmem:[#allocation7 + $0x1a8] sm:$0xff] %v845
      %910 = vst [vmem:[#allocation7 + $0x1b0] sm:$0xff] %v846
      %911 = vst [vmem:[#allocation7 + $0x1b8] sm:$0xff] %v847
      %912 = vst [vmem:[#allocation7 + $0x1c0] sm:$0xff] %v848
      %913 = vst [vmem:[#allocation7 + $0x1c8] sm:$0xff] %v849
      %914 = vst [vmem:[#allocation7 + $0x1d0] sm:$0xff] %v850
      %915 = vst [vmem:[#allocation7 + $0x1d8] sm:$0xff] %v851
      %916 = vst [vmem:[#allocation7 + $0x1e0] sm:$0xff] %v852
      %917 = vst [vmem:[#allocation7 + $0x1e8] sm:$0xff] %v853
      %918 = vst [vmem:[#allocation7 + $0x1f0] sm:$0xff] %v854
      %919 = vst [vmem:[#allocation7 + $0x1f8] sm:$0xff] %v855
    $region33: #{tpu_custom_call.1} parent=1 // pred_fallthru
      _
    // Predicated region
    $region34: #{tpu_custom_call.1} parent=1 // pred_check
      %p920 = pneg %p656
    $region35: #{tpu_custom_call.1} parent=1 // pred_check_branch
      %922 = sbr.rel (%p920) target = $region37
    $region36: #{tpu_custom_call.1} parent=1 // pred_region
      %v923 = vld [vmem:[#allocation7] sm:$0xff]
      %v924 = vld [vmem:[#allocation7 + $0x8] sm:$0xff]
      %v925 = vld [vmem:[#allocation7 + $0x10] sm:$0xff]
      %v926 = vld [vmem:[#allocation7 + $0x18] sm:$0xff]
      %v927 = vld [vmem:[#allocation7 + $0x20] sm:$0xff]
      %v928 = vld [vmem:[#allocation7 + $0x28] sm:$0xff]
      %v929 = vld [vmem:[#allocation7 + $0x30] sm:$0xff]
      %v930 = vld [vmem:[#allocation7 + $0x38] sm:$0xff]
      %v931 = vld [vmem:[#allocation7 + $0x40] sm:$0xff]
      %v932 = vld [vmem:[#allocation7 + $0x48] sm:$0xff]
      %v933 = vld [vmem:[#allocation7 + $0x50] sm:$0xff]
      %v934 = vld [vmem:[#allocation7 + $0x58] sm:$0xff]
      %v935 = vld [vmem:[#allocation7 + $0x60] sm:$0xff]
      %v936 = vld [vmem:[#allocation7 + $0x68] sm:$0xff]
      %v937 = vld [vmem:[#allocation7 + $0x70] sm:$0xff]
      %v938 = vld [vmem:[#allocation7 + $0x78] sm:$0xff]
      %v939 = vld [vmem:[#allocation7 + $0x80] sm:$0xff]
      %v940 = vld [vmem:[#allocation7 + $0x88] sm:$0xff]
      %v941 = vld [vmem:[#allocation7 + $0x90] sm:$0xff]
      %v942 = vld [vmem:[#allocation7 + $0x98] sm:$0xff]
      %v943 = vld [vmem:[#allocation7 + $0xa0] sm:$0xff]
      %v944 = vld [vmem:[#allocation7 + $0xa8] sm:$0xff]
      %v945 = vld [vmem:[#allocation7 + $0xb0] sm:$0xff]
      %v946 = vld [vmem:[#allocation7 + $0xb8] sm:$0xff]
      %v947 = vld [vmem:[#allocation7 + $0xc0] sm:$0xff]
      %v948 = vld [vmem:[#allocation7 + $0xc8] sm:$0xff]
      %v949 = vld [vmem:[#allocation7 + $0xd0] sm:$0xff]
      %v950 = vld [vmem:[#allocation7 + $0xd8] sm:$0xff]
      %v951 = vld [vmem:[#allocation7 + $0xe0] sm:$0xff]
      %v952 = vld [vmem:[#allocation7 + $0xe8] sm:$0xff]
      %v953 = vld [vmem:[#allocation7 + $0xf0] sm:$0xff]
      %v954 = vld [vmem:[#allocation7 + $0xf8] sm:$0xff]
      %v955 = vld [vmem:[#allocation7 + $0x100] sm:$0xff]
      %v956 = vld [vmem:[#allocation7 + $0x108] sm:$0xff]
      %v957 = vld [vmem:[#allocation7 + $0x110] sm:$0xff]
      %v958 = vld [vmem:[#allocation7 + $0x118] sm:$0xff]
      %v959 = vld [vmem:[#allocation7 + $0x120] sm:$0xff]
      %v960 = vld [vmem:[#allocation7 + $0x128] sm:$0xff]
      %v961 = vld [vmem:[#allocation7 + $0x130] sm:$0xff]
      %v962 = vld [vmem:[#allocation7 + $0x138] sm:$0xff]
      %v963 = vld [vmem:[#allocation7 + $0x140] sm:$0xff]
      %v964 = vld [vmem:[#allocation7 + $0x148] sm:$0xff]
      %v965 = vld [vmem:[#allocation7 + $0x150] sm:$0xff]
      %v966 = vld [vmem:[#allocation7 + $0x158] sm:$0xff]
      %v967 = vld [vmem:[#allocation7 + $0x160] sm:$0xff]
      %v968 = vld [vmem:[#allocation7 + $0x168] sm:$0xff]
      %v969 = vld [vmem:[#allocation7 + $0x170] sm:$0xff]
      %v970 = vld [vmem:[#allocation7 + $0x178] sm:$0xff]
      %v971 = vld [vmem:[#allocation7 + $0x180] sm:$0xff]
      %v972 = vld [vmem:[#allocation7 + $0x188] sm:$0xff]
      %v973 = vld [vmem:[#allocation7 + $0x190] sm:$0xff]
      %v974 = vld [vmem:[#allocation7 + $0x198] sm:$0xff]
      %v975 = vld [vmem:[#allocation7 + $0x1a0] sm:$0xff]
      %v976 = vld [vmem:[#allocation7 + $0x1a8] sm:$0xff]
      %v977 = vld [vmem:[#allocation7 + $0x1b0] sm:$0xff]
      %v978 = vld [vmem:[#allocation7 + $0x1b8] sm:$0xff]
      %v979 = vld [vmem:[#allocation7 + $0x1c0] sm:$0xff]
      %v980 = vld [vmem:[#allocation7 + $0x1c8] sm:$0xff]
      %v981 = vld [vmem:[#allocation7 + $0x1d0] sm:$0xff]
      %v982 = vld [vmem:[#allocation7 + $0x1d8] sm:$0xff]
      %v983 = vld [vmem:[#allocation7 + $0x1e0] sm:$0xff]
      %v984 = vld [vmem:[#allocation7 + $0x1e8] sm:$0xff]
      %v985 = vld [vmem:[#allocation7 + $0x1f0] sm:$0xff]
      %v986 = vld [vmem:[#allocation7 + $0x1f8] sm:$0xff]
      %v987 = vld [vmem:[%s2] sm:$0x1]
      %v989 = vlaneseq
      %v990 = vshrl.u32 %v989, 7
      %v991 = vsub.s32 0, %v990
      %v992 = vrot.slane %v987, %v991
      %v994 = vmul.f32 %v923, %v992
      %v995 = vmul.f32 %v924, %v992
      %v996 = vmul.f32 %v925, %v992
      %v997 = vmul.f32 %v926, %v992
      %v998 = vmul.f32 %v927, %v992
      %v999 = vmul.f32 %v928, %v992
      %v1000 = vmul.f32 %v929, %v992
      %v1001 = vmul.f32 %v930, %v992
      %v1002 = vmul.f32 %v931, %v992
      %v1003 = vmul.f32 %v932, %v992
      %v1004 = vmul.f32 %v933, %v992
      %v1005 = vmul.f32 %v934, %v992
      %v1006 = vmul.f32 %v935, %v992
      %v1007 = vmul.f32 %v936, %v992
      %v1008 = vmul.f32 %v937, %v992
      %v1009 = vmul.f32 %v938, %v992
      %v1010 = vmul.f32 %v939, %v992
      %v1011 = vmul.f32 %v940, %v992
      %v1012 = vmul.f32 %v941, %v992
      %v1013 = vmul.f32 %v942, %v992
      %v1014 = vmul.f32 %v943, %v992
      %v1015 = vmul.f32 %v944, %v992
      %v1016 = vmul.f32 %v945, %v992
      %v1017 = vmul.f32 %v946, %v992
      %v1018 = vmul.f32 %v947, %v992
      %v1019 = vmul.f32 %v948, %v992
      %v1020 = vmul.f32 %v949, %v992
      %v1021 = vmul.f32 %v950, %v992
      %v1022 = vmul.f32 %v951, %v992
      %v1023 = vmul.f32 %v952, %v992
      %v1024 = vmul.f32 %v953, %v992
      %v1025 = vmul.f32 %v954, %v992
      %v1026 = vmul.f32 %v955, %v992
      %v1027 = vmul.f32 %v956, %v992
      %v1028 = vmul.f32 %v957, %v992
      %v1029 = vmul.f32 %v958, %v992
      %v1030 = vmul.f32 %v959, %v992
      %v1031 = vmul.f32 %v960, %v992
      %v1032 = vmul.f32 %v961, %v992
      %v1033 = vmul.f32 %v962, %v992
      %v1034 = vmul.f32 %v963, %v992
      %v1035 = vmul.f32 %v964, %v992
      %v1036 = vmul.f32 %v965, %v992
      %v1037 = vmul.f32 %v966, %v992
      %v1038 = vmul.f32 %v967, %v992
      %v1039 = vmul.f32 %v968, %v992
      %v1040 = vmul.f32 %v969, %v992
      %v1041 = vmul.f32 %v970, %v992
      %v1042 = vmul.f32 %v971, %v992
      %v1043 = vmul.f32 %v972, %v992
      %v1044 = vmul.f32 %v973, %v992
      %v1045 = vmul.f32 %v974, %v992
      %v1046 = vmul.f32 %v975, %v992
      %v1047 = vmul.f32 %v976, %v992
      %v1048 = vmul.f32 %v977, %v992
      %v1049 = vmul.f32 %v978, %v992
      %v1050 = vmul.f32 %v979, %v992
      %v1051 = vmul.f32 %v980, %v992
      %v1052 = vmul.f32 %v981, %v992
      %v1053 = vmul.f32 %v982, %v992
      %v1054 = vmul.f32 %v983, %v992
      %v1055 = vmul.f32 %v984, %v992
      %v1056 = vmul.f32 %v985, %v992
      %v1057 = vmul.f32 %v986, %v992
      %v1058 = vld [vmem:[%s3] sm:$0x1]
      %v1060 = vlaneseq
      %v1061 = vshrl.u32 %v1060, 7
      %v1062 = vsub.s32 0, %v1061
      %v1063 = vrot.slane %v1058, %v1062
      %v1065 = vadd.f32 %v994, %v1063
      %v1066 = vadd.f32 %v995, %v1063
      %v1067 = vadd.f32 %v996, %v1063
      %v1068 = vadd.f32 %v997, %v1063
      %v1069 = vadd.f32 %v998, %v1063
      %v1070 = vadd.f32 %v999, %v1063
      %v1071 = vadd.f32 %v1000, %v1063
      %v1072 = vadd.f32 %v1001, %v1063
      %v1073 = vadd.f32 %v1002, %v1063
      %v1074 = vadd.f32 %v1003, %v1063
      %v1075 = vadd.f32 %v1004, %v1063
      %v1076 = vadd.f32 %v1005, %v1063
      %v1077 = vadd.f32 %v1006, %v1063
      %v1078 = vadd.f32 %v1007, %v1063
      %v1079 = vadd.f32 %v1008, %v1063
      %v1080 = vadd.f32 %v1009, %v1063
      %v1081 = vadd.f32 %v1010, %v1063
      %v1082 = vadd.f32 %v1011, %v1063
      %v1083 = vadd.f32 %v1012, %v1063
      %v1084 = vadd.f32 %v1013, %v1063
      %v1085 = vadd.f32 %v1014, %v1063
      %v1086 = vadd.f32 %v1015, %v1063
      %v1087 = vadd.f32 %v1016, %v1063
      %v1088 = vadd.f32 %v1017, %v1063
      %v1089 = vadd.f32 %v1018, %v1063
      %v1090 = vadd.f32 %v1019, %v1063
      %v1091 = vadd.f32 %v1020, %v1063
      %v1092 = vadd.f32 %v1021, %v1063
      %v1093 = vadd.f32 %v1022, %v1063
      %v1094 = vadd.f32 %v1023, %v1063
      %v1095 = vadd.f32 %v1024, %v1063
      %v1096 = vadd.f32 %v1025, %v1063
      %v1097 = vadd.f32 %v1026, %v1063
      %v1098 = vadd.f32 %v1027, %v1063
      %v1099 = vadd.f32 %v1028, %v1063
      %v1100 = vadd.f32 %v1029, %v1063
      %v1101 = vadd.f32 %v1030, %v1063
      %v1102 = vadd.f32 %v1031, %v1063
      %v1103 = vadd.f32 %v1032, %v1063
      %v1104 = vadd.f32 %v1033, %v1063
      %v1105 = vadd.f32 %v1034, %v1063
      %v1106 = vadd.f32 %v1035, %v1063
      %v1107 = vadd.f32 %v1036, %v1063
      %v1108 = vadd.f32 %v1037, %v1063
      %v1109 = vadd.f32 %v1038, %v1063
      %v1110 = vadd.f32 %v1039, %v1063
      %v1111 = vadd.f32 %v1040, %v1063
      %v1112 = vadd.f32 %v1041, %v1063
      %v1113 = vadd.f32 %v1042, %v1063
      %v1114 = vadd.f32 %v1043, %v1063
      %v1115 = vadd.f32 %v1044, %v1063
      %v1116 = vadd.f32 %v1045, %v1063
      %v1117 = vadd.f32 %v1046, %v1063
      %v1118 = vadd.f32 %v1047, %v1063
      %v1119 = vadd.f32 %v1048, %v1063
      %v1120 = vadd.f32 %v1049, %v1063
      %v1121 = vadd.f32 %v1050, %v1063
      %v1122 = vadd.f32 %v1051, %v1063
      %v1123 = vadd.f32 %v1052, %v1063
      %v1124 = vadd.f32 %v1053, %v1063
      %v1125 = vadd.f32 %v1054, %v1063
      %v1126 = vadd.f32 %v1055, %v1063
      %v1127 = vadd.f32 %v1056, %v1063
      %v1128 = vadd.f32 %v1057, %v1063
      %v1129 = vmax.f32 %v1065, 0.0
      %v1130 = vmax.f32 %v1066, 0.0
      %v1131 = vmax.f32 %v1067, 0.0
      %v1132 = vmax.f32 %v1068, 0.0
      %v1133 = vmax.f32 %v1069, 0.0
      %v1134 = vmax.f32 %v1070, 0.0
      %v1135 = vmax.f32 %v1071, 0.0
      %v1136 = vmax.f32 %v1072, 0.0
      %v1137 = vmax.f32 %v1073, 0.0
      %v1138 = vmax.f32 %v1074, 0.0
      %v1139 = vmax.f32 %v1075, 0.0
      %v1140 = vmax.f32 %v1076, 0.0
      %v1141 = vmax.f32 %v1077, 0.0
      %v1142 = vmax.f32 %v1078, 0.0
      %v1143 = vmax.f32 %v1079, 0.0
      %v1144 = vmax.f32 %v1080, 0.0
      %v1145 = vmax.f32 %v1081, 0.0
      %v1146 = vmax.f32 %v1082, 0.0
      %v1147 = vmax.f32 %v1083, 0.0
      %v1148 = vmax.f32 %v1084, 0.0
      %v1149 = vmax.f32 %v1085, 0.0
      %v1150 = vmax.f32 %v1086, 0.0
      %v1151 = vmax.f32 %v1087, 0.0
      %v1152 = vmax.f32 %v1088, 0.0
      %v1153 = vmax.f32 %v1089, 0.0
      %v1154 = vmax.f32 %v1090, 0.0
      %v1155 = vmax.f32 %v1091, 0.0
      %v1156 = vmax.f32 %v1092, 0.0
      %v1157 = vmax.f32 %v1093, 0.0
      %v1158 = vmax.f32 %v1094, 0.0
      %v1159 = vmax.f32 %v1095, 0.0
      %v1160 = vmax.f32 %v1096, 0.0
      %v1161 = vmax.f32 %v1097, 0.0
      %v1162 = vmax.f32 %v1098, 0.0
      %v1163 = vmax.f32 %v1099, 0.0
      %v1164 = vmax.f32 %v1100, 0.0
      %v1165 = vmax.f32 %v1101, 0.0
      %v1166 = vmax.f32 %v1102, 0.0
      %v1167 = vmax.f32 %v1103, 0.0
      %v1168 = vmax.f32 %v1104, 0.0
      %v1169 = vmax.f32 %v1105, 0.0
      %v1170 = vmax.f32 %v1106, 0.0
      %v1171 = vmax.f32 %v1107, 0.0
      %v1172 = vmax.f32 %v1108, 0.0
      %v1173 = vmax.f32 %v1109, 0.0
      %v1174 = vmax.f32 %v1110, 0.0
      %v1175 = vmax.f32 %v1111, 0.0
      %v1176 = vmax.f32 %v1112, 0.0
      %v1177 = vmax.f32 %v1113, 0.0
      %v1178 = vmax.f32 %v1114, 0.0
      %v1179 = vmax.f32 %v1115, 0.0
      %v1180 = vmax.f32 %v1116, 0.0
      %v1181 = vmax.f32 %v1117, 0.0
      %v1182 = vmax.f32 %v1118, 0.0
      %v1183 = vmax.f32 %v1119, 0.0
      %v1184 = vmax.f32 %v1120, 0.0
      %v1185 = vmax.f32 %v1121, 0.0
      %v1186 = vmax.f32 %v1122, 0.0
      %v1187 = vmax.f32 %v1123, 0.0
      %v1188 = vmax.f32 %v1124, 0.0
      %v1189 = vmax.f32 %v1125, 0.0
      %v1190 = vmax.f32 %v1126, 0.0
      %v1191 = vmax.f32 %v1127, 0.0
      %v1192 = vmax.f32 %v1128, 0.0
      %1193 = vst [vmem:[#allocation7] sm:$0xff] %v1129
      %1194 = vst [vmem:[#allocation7 + $0x8] sm:$0xff] %v1130
      %1195 = vst [vmem:[#allocation7 + $0x10] sm:$0xff] %v1131
      %1196 = vst [vmem:[#allocation7 + $0x18] sm:$0xff] %v1132
      %1197 = vst [vmem:[#allocation7 + $0x20] sm:$0xff] %v1133
      %1198 = vst [vmem:[#allocation7 + $0x28] sm:$0xff] %v1134
      %1199 = vst [vmem:[#allocation7 + $0x30] sm:$0xff] %v1135
      %1200 = vst [vmem:[#allocation7 + $0x38] sm:$0xff] %v1136
      %1201 = vst [vmem:[#allocation7 + $0x40] sm:$0xff] %v1137
      %1202 = vst [vmem:[#allocation7 + $0x48] sm:$0xff] %v1138
      %1203 = vst [vmem:[#allocation7 + $0x50] sm:$0xff] %v1139
      %1204 = vst [vmem:[#allocation7 + $0x58] sm:$0xff] %v1140
      %1205 = vst [vmem:[#allocation7 + $0x60] sm:$0xff] %v1141
      %1206 = vst [vmem:[#allocation7 + $0x68] sm:$0xff] %v1142
      %1207 = vst [vmem:[#allocation7 + $0x70] sm:$0xff] %v1143
      %1208 = vst [vmem:[#allocation7 + $0x78] sm:$0xff] %v1144
      %1209 = vst [vmem:[#allocation7 + $0x80] sm:$0xff] %v1145
      %1210 = vst [vmem:[#allocation7 + $0x88] sm:$0xff] %v1146
      %1211 = vst [vmem:[#allocation7 + $0x90] sm:$0xff] %v1147
      %1212 = vst [vmem:[#allocation7 + $0x98] sm:$0xff] %v1148
      %1213 = vst [vmem:[#allocation7 + $0xa0] sm:$0xff] %v1149
      %1214 = vst [vmem:[#allocation7 + $0xa8] sm:$0xff] %v1150
      %1215 = vst [vmem:[#allocation7 + $0xb0] sm:$0xff] %v1151
      %1216 = vst [vmem:[#allocation7 + $0xb8] sm:$0xff] %v1152
      %1217 = vst [vmem:[#allocation7 + $0xc0] sm:$0xff] %v1153
      %1218 = vst [vmem:[#allocation7 + $0xc8] sm:$0xff] %v1154
      %1219 = vst [vmem:[#allocation7 + $0xd0] sm:$0xff] %v1155
      %1220 = vst [vmem:[#allocation7 + $0xd8] sm:$0xff] %v1156
      %1221 = vst [vmem:[#allocation7 + $0xe0] sm:$0xff] %v1157
      %1222 = vst [vmem:[#allocation7 + $0xe8] sm:$0xff] %v1158
      %1223 = vst [vmem:[#allocation7 + $0xf0] sm:$0xff] %v1159
      %1224 = vst [vmem:[#allocation7 + $0xf8] sm:$0xff] %v1160
      %1225 = vst [vmem:[#allocation7 + $0x100] sm:$0xff] %v1161
      %1226 = vst [vmem:[#allocation7 + $0x108] sm:$0xff] %v1162
      %1227 = vst [vmem:[#allocation7 + $0x110] sm:$0xff] %v1163
      %1228 = vst [vmem:[#allocation7 + $0x118] sm:$0xff] %v1164
      %1229 = vst [vmem:[#allocation7 + $0x120] sm:$0xff] %v1165
      %1230 = vst [vmem:[#allocation7 + $0x128] sm:$0xff] %v1166
      %1231 = vst [vmem:[#allocation7 + $0x130] sm:$0xff] %v1167
      %1232 = vst [vmem:[#allocation7 + $0x138] sm:$0xff] %v1168
      %1233 = vst [vmem:[#allocation7 + $0x140] sm:$0xff] %v1169
      %1234 = vst [vmem:[#allocation7 + $0x148] sm:$0xff] %v1170
      %1235 = vst [vmem:[#allocation7 + $0x150] sm:$0xff] %v1171
      %1236 = vst [vmem:[#allocation7 + $0x158] sm:$0xff] %v1172
      %1237 = vst [vmem:[#allocation7 + $0x160] sm:$0xff] %v1173
      %1238 = vst [vmem:[#allocation7 + $0x168] sm:$0xff] %v1174
      %1239 = vst [vmem:[#allocation7 + $0x170] sm:$0xff] %v1175
      %1240 = vst [vmem:[#allocation7 + $0x178] sm:$0xff] %v1176
      %1241 = vst [vmem:[#allocation7 + $0x180] sm:$0xff] %v1177
      %1242 = vst [vmem:[#allocation7 + $0x188] sm:$0xff] %v1178
      %1243 = vst [vmem:[#allocation7 + $0x190] sm:$0xff] %v1179
      %1244 = vst [vmem:[#allocation7 + $0x198] sm:$0xff] %v1180
      %1245 = vst [vmem:[#allocation7 + $0x1a0] sm:$0xff] %v1181
      %1246 = vst [vmem:[#allocation7 + $0x1a8] sm:$0xff] %v1182
      %1247 = vst [vmem:[#allocation7 + $0x1b0] sm:$0xff] %v1183
      %1248 = vst [vmem:[#allocation7 + $0x1b8] sm:$0xff] %v1184
      %1249 = vst [vmem:[#allocation7 + $0x1c0] sm:$0xff] %v1185
      %1250 = vst [vmem:[#allocation7 + $0x1c8] sm:$0xff] %v1186
      %1251 = vst [vmem:[#allocation7 + $0x1d0] sm:$0xff] %v1187
      %1252 = vst [vmem:[#allocation7 + $0x1d8] sm:$0xff] %v1188
      %1253 = vst [vmem:[#allocation7 + $0x1e0] sm:$0xff] %v1189
      %1254 = vst [vmem:[#allocation7 + $0x1e8] sm:$0xff] %v1190
      %1255 = vst [vmem:[#allocation7 + $0x1f0] sm:$0xff] %v1191
      %1256 = vst [vmem:[#allocation7 + $0x1f8] sm:$0xff] %v1192
    $region37: #{tpu_custom_call.1} parent=1 // pred_fallthru
      _
    // Predicated region
    $region38: #{tpu_custom_call.1} parent=1 // pred_check
      _
    $region39: #{tpu_custom_call.1} parent=1 // pred_check_branch
      %1258 = sbr.rel (0) target = $region41
    $region40: #{tpu_custom_call.1} parent=1 // pred_region
      %s1260 = ssub.s32 8192, 8192
      %1261 = vsyncadd [#allocation4], %s1260
      %s1262 = sshll.u32 [#allocation7], 4
      %s1263 = int_to_ptr.vmem [resolvable:$true] %s1262
      %1268 = dma.vmem_to_hbm [thread:$0]  %s1263, 8192, %s4, [#allocation4], 128, 128, 8
    $region41: #{tpu_custom_call.1} parent=1 // pred_fallthru
      _
    // Predicated region
    $region42: #{tpu_custom_call.1} parent=1 // pred_check
      _
    $region43: #{tpu_custom_call.1} parent=1 // pred_check_branch
      %1270 = sbr.rel (0) target = $region45
    $region44: #{tpu_custom_call.1} parent=1 // pred_region
      %1271 = dma.done [#allocation4], 8192
    $region45: #{tpu_custom_call.1} parent=1 // pred_fallthru
      _
    %1272 = vsyncpa [#allocation3], 1
    %1273 = vsyncpa [#allocation6], 1
    %1274 = vsyncpa [#allocation4], 1

</llo_original>
